<compile_context>
chip_gen: v6e
topology: v6e:2x2x1
jax: 0.10.0
libtpu: 0.0.40
codegen_flags: <defaults>
</compile_context>

<pallas_src>
import functools

import jax
import jax.numpy as jnp
from jax import lax
from jax.experimental import pallas as pl
from jax.experimental.pallas import tpu as pltpu


# ----------------------------------------------------------------------------
# Tile-size helpers
# ----------------------------------------------------------------------------
def _tile(dim, target, *, step):
    """Largest block <= target that divides dim, aligned to `step`; falls back
    to the full dim (always a valid TPU block)."""
    if dim <= target:
        return dim
    t = (target // step) * step
    while t >= step:
        if dim % t == 0:
            return t
        t -= step
    return dim


def _chunk(dim, target):
    """Largest divisor of dim that is <= target (for time chunking)."""
    if dim <= target:
        return dim
    t = target
    while t > 1:
        if dim % t == 0:
            return t
        t -= 1
    return 1


# ----------------------------------------------------------------------------
# Tiled matmul + bias kernel (used for both the input and output projections)
# ----------------------------------------------------------------------------
def _matmul_bias_kernel(trans_rhs, a_ref, b_ref, bias_ref, o_ref):
    if trans_rhs:
        # a [tm, K] x b [tn, K] contracted on K  (no transposed copy of b needed)
        acc = lax.dot_general(a_ref[...], b_ref[...],
                              dimension_numbers=(((1,), (1,)), ((), ())),
                              preferred_element_type=jnp.float32)
    else:
        acc = jnp.dot(a_ref[...], b_ref[...],
                      preferred_element_type=jnp.float32)
    o_ref[...] = (acc + bias_ref[...]).astype(o_ref.dtype)


def pallas_matmul_bias(a, b, bias, *, trans_rhs=False,
                       tile_m=512, tile_n=512, out_dtype=jnp.float32):
    """out = a @ (b.T if trans_rhs else b) + bias, tiled over (M, N).

    a    : [M, K]
    b    : [N, K] if trans_rhs else [K, N]
    bias : [1, N]  (f32; added to the f32 accumulator)

    Both grid axes are independent -> "parallel" (megacore sharding on v7x).
    Grid iteration is row-major (j fastest), so the `a` row-tile stays
    VMEM-resident across the whole j sweep while the `b` column-tiles stream;
    a large tile_m minimizes how many times `b` is re-read from HBM.
    K (the hidden size) is kept resident per tile (no K tiling needed at LM sizes).
    """
    M, K = a.shape
    N = b.shape[0] if trans_rhs else b.shape[1]
    tm = _tile(M, tile_m, step=8)      # sublane-aligned row tiles
    tn = _tile(N, tile_n, step=128)    # lane-aligned (MXU-friendly) column tiles
    grid = (M // tm, N // tn)

    if trans_rhs:
        b_spec = pl.BlockSpec((tn, K), lambda i, j: (j, 0))
    else:
        b_spec = pl.BlockSpec((K, tn), lambda i, j: (0, j))

    return pl.pallas_call(
        functools.partial(_matmul_bias_kernel, trans_rhs),
        out_shape=jax.ShapeDtypeStruct((M, N), out_dtype),
        grid=grid,
        in_specs=[pl.BlockSpec((tm, K), lambda i, j: (i, 0)),
                  b_spec,
                  pl.BlockSpec((1, tn), lambda i, j: (0, j))],
        out_specs=pl.BlockSpec((tm, tn), lambda i, j: (i, j)),
        compiler_params=pltpu.CompilerParams(
            dimension_semantics=("parallel", "parallel")),
    )(a, b, bias)


# ----------------------------------------------------------------------------
# LSTM recurrence kernel: streams gates_in / hs in time chunks, keeps h/c in
# VMEM scratch across grid steps.  Only h @ W_hh remains on the serial path.
# ----------------------------------------------------------------------------
def lstm_chunk_kernel(unroll, gates_ref, w_hh_ref, hs_ref, h_scr, c_scr):
    """gates_ref : [tT, B, 4H]  precomputed x@W_ih^T + b (bias already folded in)
       w_hh_ref  : [H, 4H]      W_hh^T (PyTorch gate order i, f, g, o)
       hs_ref    : [tT, B, H]   output hidden states for this time chunk
       h_scr/c_scr : [B, H]     persistent LSTM state across grid steps (f32)
    """
    tT = gates_ref.shape[0]
    H = w_hh_ref.shape[0]

    @pl.when(pl.program_id(0) == 0)
    def _():
        h_scr[...] = jnp.zeros_like(h_scr)
        c_scr[...] = jnp.zeros_like(c_scr)

    def step(s, carry):
        h, c = carry
        # Gate math stays f32 (v5e has no bf16 VPU); matmul accumulates in f32.
        gates = gates_ref[s] + jnp.dot(h.astype(w_hh_ref.dtype), w_hh_ref[...],
                                       preferred_element_type=jnp.float32)
        # NOTE: at real LM sizes H is a multiple of 128, so these static gate
        # slices are lane-aligned (no cross-lane shuffles).
        i_g = jax.nn.sigmoid(gates[:, 0 * H:1 * H])
        f_g = jax.nn.sigmoid(gates[:, 1 * H:2 * H])
        g_g = jnp.tanh(gates[:, 2 * H:3 * H])
        o_g = jax.nn.sigmoid(gates[:, 3 * H:4 * H])
        c_new = f_g * c + i_g * g_g
        h_new = o_g * jnp.tanh(c_new)
        hs_ref[s] = h_new.astype(hs_ref.dtype)   # store in compute dtype
        return (h_new, c_new)

    # Unrolled (static trip count): gives the LLO scheduler visibility to
    # overlap step s+1's recurrent matmul push with step s's gate math.
    h_f, c_f = lax.fori_loop(0, tT, step, (h_scr[...], c_scr[...]),
                             unroll=unroll)
    h_scr[...] = h_f
    c_scr[...] = c_f


def pallas_lstm_recurrence(gates_in, w_hh_t, *, time_chunk=16,
                           out_dtype=jnp.float32):
    """gates_in [T, B, 4H] (f32), w_hh_t [H, 4H] -> hidden states [T, B, H]."""
    T, B, G = gates_in.shape
    H = w_hh_t.shape[0]
    tT = _chunk(T, time_chunk)
    unroll = True if tT <= 32 else 8
    return pl.pallas_call(
        functools.partial(lstm_chunk_kernel, unroll),
        out_shape=jax.ShapeDtypeStruct((T, B, H), out_dtype),
        grid=(T // tT,),
        in_specs=[pl.BlockSpec((tT, B, G), lambda t: (t, 0, 0)),
                  pl.BlockSpec((H, G), lambda t: (0, 0))],   # W_hh stays resident
        out_specs=pl.BlockSpec((tT, B, H), lambda t: (t, 0, 0)),
        scratch_shapes=[pltpu.VMEM((B, H), jnp.float32),
                        pltpu.VMEM((B, H), jnp.float32)],
        compiler_params=pltpu.CompilerParams(
            dimension_semantics=("arbitrary",)),  # sequential state carry
    )(gates_in, w_hh_t)


# ----------------------------------------------------------------------------
# Full forward pass (eval mode)
# ----------------------------------------------------------------------------
def lm_lstm_vd_forward(input_sequence, params, *, param_dtype=jnp.float32,
                       tile_m=512, tile_n=512, time_chunk=16):
    """Forward pass of LM_LSTM_VD (eval mode).

    input_sequence : int32 [B, T] token ids
    returns        : float32 [B, V, T] logits (matches PyTorch permute(0,2,1))

    param_dtype=jnp.bfloat16 enables bf16 weights/activations on the MXU
    (~4x matmul throughput on v6e/v7x, half the HBM traffic for the tied
    output weight and the hidden states); accumulation stays f32 via
    preferred_element_type and the recurrent gate math stays f32.
    """
    emb_w = params["emb"]        # [V, H]  (row `pad_index` is zero)
    w_ih_t = params["w_ih_t"]    # [H, 4H]
    w_hh_t = params["w_hh_t"]    # [H, 4H]
    b = params["b"]              # [1, 4H]  (b_ih + b_hh), f32
    b_out = params["b_out"]      # [1, V],  f32

    B, T = input_sequence.shape
    V, H = emb_w.shape
    cdt = param_dtype

    emb_c = emb_w.astype(cdt)

    # Embedding gather, produced directly time-major (no gather-then-transpose).
    # TODO(synk): fold the gather into the input-projection kernel via
    #             PrefetchScalarGridSpec + pl.Element row gather on the ids.
    emb_tbh = jnp.take(emb_c, input_sequence.T, axis=0)           # [T, B, H]
    # Variational dropout == identity in eval mode.

    # 1) Input projection hoisted out of the recurrence (M = T*B fills the MXU);
    #    the bias is folded in here, never re-broadcast per timestep.
    gates_in = pallas_matmul_bias(
        emb_tbh.reshape(T * B, H), w_ih_t.astype(cdt), b,
        trans_rhs=False, tile_m=tile_m, tile_n=tile_n,
        out_dtype=jnp.float32).reshape(T, B, 4 * H)

    # 2) Sequential LSTM recurrence (time-chunk streamed, h/c in VMEM scratch).
    #    Hidden states are emitted directly in the compute dtype.
    hs = pallas_lstm_recurrence(gates_in, w_hh_t.astype(cdt),
                                time_chunk=time_chunk,
                                out_dtype=cdt)                    # [T, B, H]

    # 3) Tied output projection, tiled over (T*B) x V with parallel grid axes.
    #    emb_w [V, H] is contracted on H directly (no materialized emb_w.T).
    logits = pallas_matmul_bias(
        hs.reshape(T * B, H), emb_c, b_out,
        trans_rhs=True, tile_m=tile_m, tile_n=tile_n,
        out_dtype=jnp.float32)                                    # [T*B, V]

    # [T, B, V] -> [B, V, T]: this permute is the module's own output contract
    # (PyTorch `.permute(0, 2, 1)`); kept out of the kernels so V stays the
    # lane dimension throughout the compute.
    return jnp.transpose(logits.reshape(T, B, V), (1, 2, 0))


# ----------------------------------------------------------------------------
# Pure-JAX reference (for correctness check)
# ----------------------------------------------------------------------------
def reference_forward(input_sequence, params):
    emb_w = params["emb"]
    B, T = input_sequence.shape
    H = emb_w.shape[1]
    emb = jnp.take(emb_w, input_sequence, axis=0)                 # [B, T, H]

    def step(carry, x_t):
        h, c = carry
        gates = x_t @ params["w_ih_t"] + h @ params["w_hh_t"] + params["b"]
        i_g = jax.nn.sigmoid(gates[:, 0 * H:1 * H])
        f_g = jax.nn.sigmoid(gates[:, 1 * H:2 * H])
        g_g = jnp.tanh(gates[:, 2 * H:3 * H])
        o_g = jax.nn.sigmoid(gates[:, 3 * H:4 * H])
        c = f_g * c + i_g * g_g
        h = o_g * jnp.tanh(c)
        return (h, c), h

    init = (jnp.zeros((B, H), jnp.float32), jnp.zeros((B, H), jnp.float32))
    _, hs = lax.scan(step, init, jnp.transpose(emb, (1, 0, 2)))   # [T, B, H]
    logits = hs @ emb_w.T + params["b_out"]                       # [T, B, V]
    return jnp.transpose(logits, (1, 2, 0))                       # [B, V, T]


if __name__ == "__main__":
    # Small shapes consistent with the module (weight tying: emb_size == hidden_size).
    B, T, H, V = 2, 8, 32, 64
    pad_index = 0

    key = jax.random.PRNGKey(0)
    ks = jax.random.split(key, 7)
    bound = 1.0 / (H ** 0.5)

    emb_w = jax.random.normal(ks[0], (V, H), jnp.float32)
    emb_w = emb_w.at[pad_index].set(0.0)                 # nn.Embedding padding_idx
    w_ih = jax.random.uniform(ks[1], (4 * H, H), jnp.float32, -bound, bound)
    w_hh = jax.random.uniform(ks[2], (4 * H, H), jnp.float32, -bound, bound)
    b_ih = jax.random.uniform(ks[3], (4 * H,), jnp.float32, -bound, bound)
    b_hh = jax.random.uniform(ks[4], (4 * H,), jnp.float32, -bound, bound)
    b_out = jax.random.uniform(ks[5], (V,), jnp.float32, -bound, bound)
    input_sequence = jax.random.randint(ks[6], (B, T), 0, V, dtype=jnp.int32)

    params = {
        "emb": emb_w,
        "w_ih_t": w_ih.T,
        "w_hh_t": w_hh.T,
        "b": (b_ih + b_hh)[None, :],
        "b_out": b_out[None, :],
    }

    fwd = jax.jit(lambda x: lm_lstm_vd_forward(x, params))
    out = jax.block_until_ready(fwd(input_sequence))

    assert out.shape == (B, V, T), out.shape
    ref = reference_forward(input_sequence, params)
    max_err = float(jnp.max(jnp.abs(out - ref)))
    assert max_err < 2e-2, f"max abs error {max_err}"

    print("KERNEL_OK")
</pallas_src>

<mosaic_0001>
module attributes {stable_mosaic.version = 11 : i64} {
  func.func @_matmul_bias_kernel(%arg0: i32, %arg1: i32, %arg2: memref<16x32xf32, #tpu.memory_space<vmem>>, %arg3: memref<32x128xf32, #tpu.memory_space<vmem>>, %arg4: memref<1x128xf32, #tpu.memory_space<vmem>>, %arg5: memref<16x128xf32, #tpu.memory_space<vmem>>) attributes {dimension_semantics = [#tpu.dimension_semantics<parallel>, #tpu.dimension_semantics<parallel>], iteration_bounds = array<i64: 1, 1>, scalar_prefetch = 0 : i64, scratch_operands = 0 : i64, tpu.core_type = #tpu.core_type<tc>, window_params = [{transform_indices = @transform_0, window_bounds = array<i64: 16, 32>}, {transform_indices = @transform_1, window_bounds = array<i64: 32, 128>}, {transform_indices = @transform_2, window_bounds = array<i64: 1, 128>}, {transform_indices = @transform_3, window_bounds = array<i64: 16, 128>}]} {
    %c0 = arith.constant 0 : index
    %c0_0 = arith.constant 0 : index
    %0 = vector.load %arg2[%c0, %c0_0] : memref<16x32xf32, #tpu.memory_space<vmem>>, vector<16x32xf32>
    %c0_1 = arith.constant 0 : index
    %c0_2 = arith.constant 0 : index
    %1 = vector.load %arg3[%c0_1, %c0_2] : memref<32x128xf32, #tpu.memory_space<vmem>>, vector<32x128xf32>
    %cst = arith.constant dense<0.000000e+00> : vector<16x128xf32>
    %2 = tpu.matmul %0, %1, %cst {dimension_numbers = #tpu.dot_dimension_numbers<[1], [0], [0], [1], [0, 0, 1, 1], [], []>} : vector<16x32xf32>, vector<32x128xf32>, vector<16x128xf32> -> vector<16x128xf32>
    %c0_3 = arith.constant 0 : index
    %c0_4 = arith.constant 0 : index
    %3 = vector.load %arg4[%c0_3, %c0_4] : memref<1x128xf32, #tpu.memory_space<vmem>>, vector<1x128xf32>
    %4 = vector.broadcast %3 : vector<1x128xf32> to vector<16x128xf32>
    %5 = arith.addf %2, %4 : vector<16x128xf32>
    %c0_5 = arith.constant 0 : index
    %c0_6 = arith.constant 0 : index
    %6 = vector.load %arg5[%c0_5, %c0_6] : memref<16x128xf32, #tpu.memory_space<vmem>>, vector<16x128xf32>
    tpu.vector_store %arg5[%c0_5, %c0_6], %5 {strides = array<i32>} : memref<16x128xf32, #tpu.memory_space<vmem>>, vector<16x128xf32>,
    return
  }
  func.func @transform_0(%arg0: i32, %arg1: i32) -> (i32, i32) {
    %c0_i32 = arith.constant 0 : i32
    %c0_i32_0 = arith.constant 0 : i32
    return %arg0, %c0_i32 : i32, i32
  }
  func.func @transform_1(%arg0: i32, %arg1: i32) -> (i32, i32) {
    %c0_i32 = arith.constant 0 : i32
    %c0_i32_0 = arith.constant 0 : i32
    return %c0_i32, %arg1 : i32, i32
  }
  func.func @transform_2(%arg0: i32, %arg1: i32) -> (i32, i32) {
    %c0_i32 = arith.constant 0 : i32
    %c0_i32_0 = arith.constant 0 : i32
    return %c0_i32, %arg1 : i32, i32
  }
  func.func @transform_3(%arg0: i32, %arg1: i32) -> (i32, i32) {
    %c0_i32 = arith.constant 0 : i32
    return %arg0, %arg1 : i32, i32
  }
}

module attributes {stable_mosaic.version = 11 : i64} {
  func.func @_matmul_bias_kernel(%arg0: i32, %arg1: i32, %arg2: memref<16x32xf32, #tpu.memory_space<vmem>>, %arg3: memref<64x32xf32, #tpu.memory_space<vmem>>, %arg4: memref<1x64xf32, #tpu.memory_space<vmem>>, %arg5: memref<16x64xf32, #tpu.memory_space<vmem>>) attributes {dimension_semantics = [#tpu.dimension_semantics<parallel>, #tpu.dimension_semantics<parallel>], iteration_bounds = array<i64: 1, 1>, scalar_prefetch = 0 : i64, scratch_operands = 0 : i64, tpu.core_type = #tpu.core_type<tc>, window_params = [{transform_indices = @transform_0, window_bounds = array<i64: 16, 32>}, {transform_indices = @transform_1, window_bounds = array<i64: 64, 32>}, {transform_indices = @transform_2, window_bounds = array<i64: 1, 64>}, {transform_indices = @transform_3, window_bounds = array<i64: 16, 64>}]} {
    %c0 = arith.constant 0 : index
    %c0_0 = arith.constant 0 : index
    %0 = vector.load %arg2[%c0, %c0_0] : memref<16x32xf32, #tpu.memory_space<vmem>>, vector<16x32xf32>
    %c0_1 = arith.constant 0 : index
    %c0_2 = arith.constant 0 : index
    %1 = vector.load %arg3[%c0_1, %c0_2] : memref<64x32xf32, #tpu.memory_space<vmem>>, vector<64x32xf32>
    %cst = arith.constant dense<0.000000e+00> : vector<16x64xf32>
    %2 = tpu.matmul %0, %1, %cst {dimension_numbers = #tpu.dot_dimension_numbers<[1], [1], [0], [0], [0, 0, 1, 0], [], []>} : vector<16x32xf32>, vector<64x32xf32>, vector<16x64xf32> -> vector<16x64xf32>
    %c0_3 = arith.constant 0 : index
    %c0_4 = arith.constant 0 : index
    %3 = vector.load %arg4[%c0_3, %c0_4] : memref<1x64xf32, #tpu.memory_space<vmem>>, vector<1x64xf32>
    %4 = vector.broadcast %3 : vector<1x64xf32> to vector<16x64xf32>
    %5 = arith.addf %2, %4 : vector<16x64xf32>
    %c0_5 = arith.constant 0 : index
    %c0_6 = arith.constant 0 : index
    %6 = vector.load %arg5[%c0_5, %c0_6] : memref<16x64xf32, #tpu.memory_space<vmem>>, vector<16x64xf32>
    tpu.vector_store %arg5[%c0_5, %c0_6], %5 {strides = array<i32>} : memref<16x64xf32, #tpu.memory_space<vmem>>, vector<16x64xf32>,
    return
  }
  func.func @transform_0(%arg0: i32, %arg1: i32) -> (i32, i32) {
    %c0_i32 = arith.constant 0 : i32
    %c0_i32_0 = arith.constant 0 : i32
    return %arg0, %c0_i32 : i32, i32
  }
  func.func @transform_1(%arg0: i32, %arg1: i32) -> (i32, i32) {
    %c0_i32 = arith.constant 0 : i32
    %c0_i32_0 = arith.constant 0 : i32
    return %arg1, %c0_i32 : i32, i32
  }
  func.func @transform_2(%arg0: i32, %arg1: i32) -> (i32, i32) {
    %c0_i32 = arith.constant 0 : i32
    %c0_i32_0 = arith.constant 0 : i32
    return %c0_i32, %arg1 : i32, i32
  }
  func.func @transform_3(%arg0: i32, %arg1: i32) -> (i32, i32) {
    %c0_i32 = arith.constant 0 : i32
    return %arg0, %arg1 : i32, i32
  }
}

module attributes {stable_mosaic.version = 11 : i64} {
  func.func @lstm_chunk_kernel(%arg0: i32, %arg1: memref<8x2x128xf32, #tpu.memory_space<vmem>>, %arg2: memref<32x128xf32, #tpu.memory_space<vmem>>, %arg3: memref<8x2x32xf32, #tpu.memory_space<vmem>>, %arg4: memref<2x32xf32, #tpu.memory_space<vmem>>, %arg5: memref<2x32xf32, #tpu.memory_space<vmem>>) attributes {dimension_semantics = [#tpu.dimension_semantics<arbitrary>], iteration_bounds = array<i64: 1>, scalar_prefetch = 0 : i64, scratch_operands = 2 : i64, tpu.core_type = #tpu.core_type<tc>, window_params = [{transform_indices = @transform_0, window_bounds = array<i64: 8, 2, 128>}, {pipeline_mode = #tpu.pipeline_mode<synchronous>, transform_indices = @transform_1, window_bounds = array<i64: 32, 128>}, {transform_indices = @transform_2, window_bounds = array<i64: 8, 2, 32>}]} {
    %c0_i32 = arith.constant 0 : i32
    %0 = arith.cmpi eq, %arg0, %c0_i32 : i32
    %1 = arith.extui %0 : i1 to i32
    %c0_i32_0 = arith.constant 0 : i32
    %2 = arith.cmpi ne, %1, %c0_i32_0 : i32
    scf.if %2 {
      %cst_88 = arith.constant 0.000000e+00 : f32
      %287 = vector.broadcast %cst_88 : f32 to vector<2x32xf32>
      %c0_89 = arith.constant 0 : index
      %c0_90 = arith.constant 0 : index
      %288 = vector.load %arg4[%c0_89, %c0_90] : memref<2x32xf32, #tpu.memory_space<vmem>>, vector<2x32xf32>
      tpu.vector_store %arg4[%c0_89, %c0_90], %287 {strides = array<i32>} : memref<2x32xf32, #tpu.memory_space<vmem>>, vector<2x32xf32>,
      %cst_91 = arith.constant 0.000000e+00 : f32
      %289 = vector.broadcast %cst_91 : f32 to vector<2x32xf32>
      %c0_92 = arith.constant 0 : index
      %c0_93 = arith.constant 0 : index
      %290 = vector.load %arg5[%c0_92, %c0_93] : memref<2x32xf32, #tpu.memory_space<vmem>>, vector<2x32xf32>
      tpu.vector_store %arg5[%c0_92, %c0_93], %289 {strides = array<i32>} : memref<2x32xf32, #tpu.memory_space<vmem>>, vector<2x32xf32>,
    } else {
    }
    %c0 = arith.constant 0 : index
    %c0_1 = arith.constant 0 : index
    %3 = vector.load %arg4[%c0, %c0_1] : memref<2x32xf32, #tpu.memory_space<vmem>>, vector<2x32xf32>
    %c0_2 = arith.constant 0 : index
    %c0_3 = arith.constant 0 : index
    %4 = vector.load %arg5[%c0_2, %c0_3] : memref<2x32xf32, #tpu.memory_space<vmem>>, vector<2x32xf32>
    %c0_i32_4 = arith.constant 0 : i32
    %5 = arith.index_cast %c0_i32_4 : i32 to index
    %c0_5 = arith.constant 0 : index
    %c0_6 = arith.constant 0 : index
    %6 = vector.load %arg1[%5, %c0_5, %c0_6] : memref<8x2x128xf32, #tpu.memory_space<vmem>>, vector<1x2x128xf32>
    %7 = vector.shape_cast %6 : vector<1x2x128xf32> to vector<2x128xf32>
    %c0_7 = arith.constant 0 : index
    %c0_8 = arith.constant 0 : index
    %8 = vector.load %arg2[%c0_7, %c0_8] : memref<32x128xf32, #tpu.memory_space<vmem>>, vector<32x128xf32>
    %cst = arith.constant dense<0.000000e+00> : vector<2x128xf32>
    %9 = tpu.matmul %3, %8, %cst {dimension_numbers = #tpu.dot_dimension_numbers<[1], [0], [0], [1], [0, 0, 1, 1], [], []>} : vector<2x32xf32>, vector<32x128xf32>, vector<2x128xf32> -> vector<2x128xf32>
    %10 = arith.addf %7, %9 : vector<2x128xf32>
    %11 = vector.extract_strided_slice %10 {offsets = [0, 0], sizes = [2, 32], strides = [1, 1]} : vector<2x128xf32> to vector<2x32xf32>
    %12 = arith.negf %11 : vector<2x32xf32>
    %13 = math.exp %12 : vector<2x32xf32>
    %cst_9 = arith.constant 1.000000e+00 : f32
    %14 = vector.broadcast %cst_9 : f32 to vector<2x32xf32>
    %15 = arith.addf %14, %13 : vector<2x32xf32>
    %16 = arith.divf %14, %15 : vector<2x32xf32>
    %17 = vector.extract_strided_slice %10 {offsets = [0, 32], sizes = [2, 32], strides = [1, 1]} : vector<2x128xf32> to vector<2x32xf32>
    %18 = arith.negf %17 : vector<2x32xf32>
    %19 = math.exp %18 : vector<2x32xf32>
    %cst_10 = arith.constant 1.000000e+00 : f32
    %20 = vector.broadcast %cst_10 : f32 to vector<2x32xf32>
    %21 = arith.addf %20, %19 : vector<2x32xf32>
    %22 = arith.divf %20, %21 : vector<2x32xf32>
    %23 = vector.extract_strided_slice %10 {offsets = [0, 64], sizes = [2, 32], strides = [1, 1]} : vector<2x128xf32> to vector<2x32xf32>
    %24 = math.tanh %23 : vector<2x32xf32>
    %25 = vector.extract_strided_slice %10 {offsets = [0, 96], sizes = [2, 32], strides = [1, 1]} : vector<2x128xf32> to vector<2x32xf32>
    %26 = arith.negf %25 : vector<2x32xf32>
    %27 = math.exp %26 : vector<2x32xf32>
    %cst_11 = arith.constant 1.000000e+00 : f32
    %28 = vector.broadcast %cst_11 : f32 to vector<2x32xf32>
    %29 = arith.addf %28, %27 : vector<2x32xf32>
    %30 = arith.divf %28, %29 : vector<2x32xf32>
    %31 = arith.mulf %22, %4 : vector<2x32xf32>
    %32 = arith.mulf %16, %24 : vector<2x32xf32>
    %33 = arith.addf %31, %32 : vector<2x32xf32>
    %34 = math.tanh %33 : vector<2x32xf32>
    %35 = arith.mulf %30, %34 : vector<2x32xf32>
    %36 = arith.index_cast %c0_i32_4 : i32 to index
    %c0_12 = arith.constant 0 : index
    %c0_13 = arith.constant 0 : index
    %37 = vector.load %arg3[%36, %c0_12, %c0_13] : memref<8x2x32xf32, #tpu.memory_space<vmem>>, vector<1x2x32xf32>
    %38 = vector.shape_cast %37 : vector<1x2x32xf32> to vector<2x32xf32>
    %39 = vector.shape_cast %35 : vector<2x32xf32> to vector<1x2x32xf32>
    tpu.vector_store %arg3[%36, %c0_12, %c0_13], %39 {strides = array<i32>} : memref<8x2x32xf32, #tpu.memory_space<vmem>>, vector<1x2x32xf32>,
    %c1_i32 = arith.constant 1 : i32
    %40 = arith.index_cast %c1_i32 : i32 to index
    %c0_14 = arith.constant 0 : index
    %c0_15 = arith.constant 0 : index
    %41 = vector.load %arg1[%40, %c0_14, %c0_15] : memref<8x2x128xf32, #tpu.memory_space<vmem>>, vector<1x2x128xf32>
    %42 = vector.shape_cast %41 : vector<1x2x128xf32> to vector<2x128xf32>
    %c0_16 = arith.constant 0 : index
    %c0_17 = arith.constant 0 : index
    %43 = vector.load %arg2[%c0_16, %c0_17] : memref<32x128xf32, #tpu.memory_space<vmem>>, vector<32x128xf32>
    %cst_18 = arith.constant dense<0.000000e+00> : vector<2x128xf32>
    %44 = tpu.matmul %35, %43, %cst_18 {dimension_numbers = #tpu.dot_dimension_numbers<[1], [0], [0], [1], [0, 0, 1, 1], [], []>} : vector<2x32xf32>, vector<32x128xf32>, vector<2x128xf32> -> vector<2x128xf32>
    %45 = arith.addf %42, %44 : vector<2x128xf32>
    %46 = vector.extract_strided_slice %45 {offsets = [0, 0], sizes = [2, 32], strides = [1, 1]} : vector<2x128xf32> to vector<2x32xf32>
    %47 = arith.negf %46 : vector<2x32xf32>
    %48 = math.exp %47 : vector<2x32xf32>
    %cst_19 = arith.constant 1.000000e+00 : f32
    %49 = vector.broadcast %cst_19 : f32 to vector<2x32xf32>
    %50 = arith.addf %49, %48 : vector<2x32xf32>
    %51 = arith.divf %49, %50 : vector<2x32xf32>
    %52 = vector.extract_strided_slice %45 {offsets = [0, 32], sizes = [2, 32], strides = [1, 1]} : vector<2x128xf32> to vector<2x32xf32>
    %53 = arith.negf %52 : vector<2x32xf32>
    %54 = math.exp %53 : vector<2x32xf32>
    %cst_20 = arith.constant 1.000000e+00 : f32
    %55 = vector.broadcast %cst_20 : f32 to vector<2x32xf32>
    %56 = arith.addf %55, %54 : vector<2x32xf32>
    %57 = arith.divf %55, %56 : vector<2x32xf32>
    %58 = vector.extract_strided_slice %45 {offsets = [0, 64], sizes = [2, 32], strides = [1, 1]} : vector<2x128xf32> to vector<2x32xf32>
    %59 = math.tanh %58 : vector<2x32xf32>
    %60 = vector.extract_strided_slice %45 {offsets = [0, 96], sizes = [2, 32], strides = [1, 1]} : vector<2x128xf32> to vector<2x32xf32>
    %61 = arith.negf %60 : vector<2x32xf32>
    %62 = math.exp %61 : vector<2x32xf32>
    %cst_21 = arith.constant 1.000000e+00 : f32
    %63 = vector.broadcast %cst_21 : f32 to vector<2x32xf32>
    %64 = arith.addf %63, %62 : vector<2x32xf32>
    %65 = arith.divf %63, %64 : vector<2x32xf32>
    %66 = arith.mulf %57, %33 : vector<2x32xf32>
    %67 = arith.mulf %51, %59 : vector<2x32xf32>
    %68 = arith.addf %66, %67 : vector<2x32xf32>
    %69 = math.tanh %68 : vector<2x32xf32>
    %70 = arith.mulf %65, %69 : vector<2x32xf32>
    %71 = arith.index_cast %c1_i32 : i32 to index
    %c0_22 = arith.constant 0 : index
    %c0_23 = arith.constant 0 : index
    %72 = vector.load %arg3[%71, %c0_22, %c0_23] : memref<8x2x32xf32, #tpu.memory_space<vmem>>, vector<1x2x32xf32>
    %73 = vector.shape_cast %72 : vector<1x2x32xf32> to vector<2x32xf32>
    %74 = vector.shape_cast %70 : vector<2x32xf32> to vector<1x2x32xf32>
    tpu.vector_store %arg3[%71, %c0_22, %c0_23], %74 {strides = array<i32>} : memref<8x2x32xf32, #tpu.memory_space<vmem>>, vector<1x2x32xf32>,
    %c2_i32 = arith.constant 2 : i32
    %75 = arith.index_cast %c2_i32 : i32 to index
    %c0_24 = arith.constant 0 : index
    %c0_25 = arith.constant 0 : index
    %76 = vector.load %arg1[%75, %c0_24, %c0_25] : memref<8x2x128xf32, #tpu.memory_space<vmem>>, vector<1x2x128xf32>
    %77 = vector.shape_cast %76 : vector<1x2x128xf32> to vector<2x128xf32>
    %c0_26 = arith.constant 0 : index
    %c0_27 = arith.constant 0 : index
    %78 = vector.load %arg2[%c0_26, %c0_27] : memref<32x128xf32, #tpu.memory_space<vmem>>, vector<32x128xf32>
    %cst_28 = arith.constant dense<0.000000e+00> : vector<2x128xf32>
    %79 = tpu.matmul %70, %78, %cst_28 {dimension_numbers = #tpu.dot_dimension_numbers<[1], [0], [0], [1], [0, 0, 1, 1], [], []>} : vector<2x32xf32>, vector<32x128xf32>, vector<2x128xf32> -> vector<2x128xf32>
    %80 = arith.addf %77, %79 : vector<2x128xf32>
    %81 = vector.extract_strided_slice %80 {offsets = [0, 0], sizes = [2, 32], strides = [1, 1]} : vector<2x128xf32> to vector<2x32xf32>
    %82 = arith.negf %81 : vector<2x32xf32>
    %83 = math.exp %82 : vector<2x32xf32>
    %cst_29 = arith.constant 1.000000e+00 : f32
    %84 = vector.broadcast %cst_29 : f32 to vector<2x32xf32>
    %85 = arith.addf %84, %83 : vector<2x32xf32>
    %86 = arith.divf %84, %85 : vector<2x32xf32>
    %87 = vector.extract_strided_slice %80 {offsets = [0, 32], sizes = [2, 32], strides = [1, 1]} : vector<2x128xf32> to vector<2x32xf32>
    %88 = arith.negf %87 : vector<2x32xf32>
    %89 = math.exp %88 : vector<2x32xf32>
    %cst_30 = arith.constant 1.000000e+00 : f32
    %90 = vector.broadcast %cst_30 : f32 to vector<2x32xf32>
    %91 = arith.addf %90, %89 : vector<2x32xf32>
    %92 = arith.divf %90, %91 : vector<2x32xf32>
    %93 = vector.extract_strided_slice %80 {offsets = [0, 64], sizes = [2, 32], strides = [1, 1]} : vector<2x128xf32> to vector<2x32xf32>
    %94 = math.tanh %93 : vector<2x32xf32>
    %95 = vector.extract_strided_slice %80 {offsets = [0, 96], sizes = [2, 32], strides = [1, 1]} : vector<2x128xf32> to vector<2x32xf32>
    %96 = arith.negf %95 : vector<2x32xf32>
    %97 = math.exp %96 : vector<2x32xf32>
    %cst_31 = arith.constant 1.000000e+00 : f32
    %98 = vector.broadcast %cst_31 : f32 to vector<2x32xf32>
    %99 = arith.addf %98, %97 : vector<2x32xf32>
    %100 = arith.divf %98, %99 : vector<2x32xf32>
    %101 = arith.mulf %92, %68 : vector<2x32xf32>
    %102 = arith.mulf %86, %94 : vector<2x32xf32>
    %103 = arith.addf %101, %102 : vector<2x32xf32>
    %104 = math.tanh %103 : vector<2x32xf32>
    %105 = arith.mulf %100, %104 : vector<2x32xf32>
    %106 = arith.index_cast %c2_i32 : i32 to index
    %c0_32 = arith.constant 0 : index
    %c0_33 = arith.constant 0 : index
    %107 = vector.load %arg3[%106, %c0_32, %c0_33] : memref<8x2x32xf32, #tpu.memory_space<vmem>>, vector<1x2x32xf32>
    %108 = vector.shape_cast %107 : vector<1x2x32xf32> to vector<2x32xf32>
    %109 = vector.shape_cast %105 : vector<2x32xf32> to vector<1x2x32xf32>
    tpu.vector_store %arg3[%106, %c0_32, %c0_33], %109 {strides = array<i32>} : memref<8x2x32xf32, #tpu.memory_space<vmem>>, vector<1x2x32xf32>,
    %c3_i32 = arith.constant 3 : i32
    %110 = arith.index_cast %c3_i32 : i32 to index
    %c0_34 = arith.constant 0 : index
    %c0_35 = arith.constant 0 : index
    %111 = vector.load %arg1[%110, %c0_34, %c0_35] : memref<8x2x128xf32, #tpu.memory_space<vmem>>, vector<1x2x128xf32>
    %112 = vector.shape_cast %111 : vector<1x2x128xf32> to vector<2x128xf32>
    %c0_36 = arith.constant 0 : index
    %c0_37 = arith.constant 0 : index
    %113 = vector.load %arg2[%c0_36, %c0_37] : memref<32x128xf32, #tpu.memory_space<vmem>>, vector<32x128xf32>
    %cst_38 = arith.constant dense<0.000000e+00> : vector<2x128xf32>
    %114 = tpu.matmul %105, %113, %cst_38 {dimension_numbers = #tpu.dot_dimension_numbers<[1], [0], [0], [1], [0, 0, 1, 1], [], []>} : vector<2x32xf32>, vector<32x128xf32>, vector<2x128xf32> -> vector<2x128xf32>
    %115 = arith.addf %112, %114 : vector<2x128xf32>
    %116 = vector.extract_strided_slice %115 {offsets = [0, 0], sizes = [2, 32], strides = [1, 1]} : vector<2x128xf32> to vector<2x32xf32>
    %117 = arith.negf %116 : vector<2x32xf32>
    %118 = math.exp %117 : vector<2x32xf32>
    %cst_39 = arith.constant 1.000000e+00 : f32
    %119 = vector.broadcast %cst_39 : f32 to vector<2x32xf32>
    %120 = arith.addf %119, %118 : vector<2x32xf32>
    %121 = arith.divf %119, %120 : vector<2x32xf32>
    %122 = vector.extract_strided_slice %115 {offsets = [0, 32], sizes = [2, 32], strides = [1, 1]} : vector<2x128xf32> to vector<2x32xf32>
    %123 = arith.negf %122 : vector<2x32xf32>
    %124 = math.exp %123 : vector<2x32xf32>
    %cst_40 = arith.constant 1.000000e+00 : f32
    %125 = vector.broadcast %cst_40 : f32 to vector<2x32xf32>
    %126 = arith.addf %125, %124 : vector<2x32xf32>
    %127 = arith.divf %125, %126 : vector<2x32xf32>
    %128 = vector.extract_strided_slice %115 {offsets = [0, 64], sizes = [2, 32], strides = [1, 1]} : vector<2x128xf32> to vector<2x32xf32>
    %129 = math.tanh %128 : vector<2x32xf32>
    %130 = vector.extract_strided_slice %115 {offsets = [0, 96], sizes = [2, 32], strides = [1, 1]} : vector<2x128xf32> to vector<2x32xf32>
    %131 = arith.negf %130 : vector<2x32xf32>
    %132 = math.exp %131 : vector<2x32xf32>
    %cst_41 = arith.constant 1.000000e+00 : f32
    %133 = vector.broadcast %cst_41 : f32 to vector<2x32xf32>
    %134 = arith.addf %133, %132 : vector<2x32xf32>
    %135 = arith.divf %133, %134 : vector<2x32xf32>
    %136 = arith.mulf %127, %103 : vector<2x32xf32>
    %137 = arith.mulf %121, %129 : vector<2x32xf32>
    %138 = arith.addf %136, %137 : vector<2x32xf32>
    %139 = math.tanh %138 : vector<2x32xf32>
    %140 = arith.mulf %135, %139 : vector<2x32xf32>
    %141 = arith.index_cast %c3_i32 : i32 to index
    %c0_42 = arith.constant 0 : index
    %c0_43 = arith.constant 0 : index
    %142 = vector.load %arg3[%141, %c0_42, %c0_43] : memref<8x2x32xf32, #tpu.memory_space<vmem>>, vector<1x2x32xf32>
    %143 = vector.shape_cast %142 : vector<1x2x32xf32> to vector<2x32xf32>
    %144 = vector.shape_cast %140 : vector<2x32xf32> to vector<1x2x32xf32>
    tpu.vector_store %arg3[%141, %c0_42, %c0_43], %144 {strides = array<i32>} : memref<8x2x32xf32, #tpu.memory_space<vmem>>, vector<1x2x32xf32>,
    %c4_i32 = arith.constant 4 : i32
    %145 = arith.index_cast %c4_i32 : i32 to index
    %c0_44 = arith.constant 0 : index
    %c0_45 = arith.constant 0 : index
    %146 = vector.load %arg1[%145, %c0_44, %c0_45] : memref<8x2x128xf32, #tpu.memory_space<vmem>>, vector<1x2x128xf32>
    %147 = vector.shape_cast %146 : vector<1x2x128xf32> to vector<2x128xf32>
    %c0_46 = arith.constant 0 : index
    %c0_47 = arith.constant 0 : index
    %148 = vector.load %arg2[%c0_46, %c0_47] : memref<32x128xf32, #tpu.memory_space<vmem>>, vector<32x128xf32>
    %cst_48 = arith.constant dense<0.000000e+00> : vector<2x128xf32>
    %149 = tpu.matmul %140, %148, %cst_48 {dimension_numbers = #tpu.dot_dimension_numbers<[1], [0], [0], [1], [0, 0, 1, 1], [], []>} : vector<2x32xf32>, vector<32x128xf32>, vector<2x128xf32> -> vector<2x128xf32>
    %150 = arith.addf %147, %149 : vector<2x128xf32>
    %151 = vector.extract_strided_slice %150 {offsets = [0, 0], sizes = [2, 32], strides = [1, 1]} : vector<2x128xf32> to vector<2x32xf32>
    %152 = arith.negf %151 : vector<2x32xf32>
    %153 = math.exp %152 : vector<2x32xf32>
    %cst_49 = arith.constant 1.000000e+00 : f32
    %154 = vector.broadcast %cst_49 : f32 to vector<2x32xf32>
    %155 = arith.addf %154, %153 : vector<2x32xf32>
    %156 = arith.divf %154, %155 : vector<2x32xf32>
    %157 = vector.extract_strided_slice %150 {offsets = [0, 32], sizes = [2, 32], strides = [1, 1]} : vector<2x128xf32> to vector<2x32xf32>
    %158 = arith.negf %157 : vector<2x32xf32>
    %159 = math.exp %158 : vector<2x32xf32>
    %cst_50 = arith.constant 1.000000e+00 : f32
    %160 = vector.broadcast %cst_50 : f32 to vector<2x32xf32>
    %161 = arith.addf %160, %159 : vector<2x32xf32>
    %162 = arith.divf %160, %161 : vector<2x32xf32>
    %163 = vector.extract_strided_slice %150 {offsets = [0, 64], sizes = [2, 32], strides = [1, 1]} : vector<2x128xf32> to vector<2x32xf32>
    %164 = math.tanh %163 : vector<2x32xf32>
    %165 = vector.extract_strided_slice %150 {offsets = [0, 96], sizes = [2, 32], strides = [1, 1]} : vector<2x128xf32> to vector<2x32xf32>
    %166 = arith.negf %165 : vector<2x32xf32>
    %167 = math.exp %166 : vector<2x32xf32>
    %cst_51 = arith.constant 1.000000e+00 : f32
    %168 = vector.broadcast %cst_51 : f32 to vector<2x32xf32>
    %169 = arith.addf %168, %167 : vector<2x32xf32>
    %170 = arith.divf %168, %169 : vector<2x32xf32>
    %171 = arith.mulf %162, %138 : vector<2x32xf32>
    %172 = arith.mulf %156, %164 : vector<2x32xf32>
    %173 = arith.addf %171, %172 : vector<2x32xf32>
    %174 = math.tanh %173 : vector<2x32xf32>
    %175 = arith.mulf %170, %174 : vector<2x32xf32>
    %176 = arith.index_cast %c4_i32 : i32 to index
    %c0_52 = arith.constant 0 : index
    %c0_53 = arith.constant 0 : index
    %177 = vector.load %arg3[%176, %c0_52, %c0_53] : memref<8x2x32xf32, #tpu.memory_space<vmem>>, vector<1x2x32xf32>
    %178 = vector.shape_cast %177 : vector<1x2x32xf32> to vector<2x32xf32>
    %179 = vector.shape_cast %175 : vector<2x32xf32> to vector<1x2x32xf32>
    tpu.vector_store %arg3[%176, %c0_52, %c0_53], %179 {strides = array<i32>} : memref<8x2x32xf32, #tpu.memory_space<vmem>>, vector<1x2x32xf32>,
    %c5_i32 = arith.constant 5 : i32
    %180 = arith.index_cast %c5_i32 : i32 to index
    %c0_54 = arith.constant 0 : index
    %c0_55 = arith.constant 0 : index
    %181 = vector.load %arg1[%180, %c0_54, %c0_55] : memref<8x2x128xf32, #tpu.memory_space<vmem>>, vector<1x2x128xf32>
    %182 = vector.shape_cast %181 : vector<1x2x128xf32> to vector<2x128xf32>
    %c0_56 = arith.constant 0 : index
    %c0_57 = arith.constant 0 : index
    %183 = vector.load %arg2[%c0_56, %c0_57] : memref<32x128xf32, #tpu.memory_space<vmem>>, vector<32x128xf32>
    %cst_58 = arith.constant dense<0.000000e+00> : vector<2x128xf32>
    %184 = tpu.matmul %175, %183, %cst_58 {dimension_numbers = #tpu.dot_dimension_numbers<[1], [0], [0], [1], [0, 0, 1, 1], [], []>} : vector<2x32xf32>, vector<32x128xf32>, vector<2x128xf32> -> vector<2x128xf32>
    %185 = arith.addf %182, %184 : vector<2x128xf32>
    %186 = vector.extract_strided_slice %185 {offsets = [0, 0], sizes = [2, 32], strides = [1, 1]} : vector<2x128xf32> to vector<2x32xf32>
    %187 = arith.negf %186 : vector<2x32xf32>
    %188 = math.exp %187 : vector<2x32xf32>
    %cst_59 = arith.constant 1.000000e+00 : f32
    %189 = vector.broadcast %cst_59 : f32 to vector<2x32xf32>
    %190 = arith.addf %189, %188 : vector<2x32xf32>
    %191 = arith.divf %189, %190 : vector<2x32xf32>
    %192 = vector.extract_strided_slice %185 {offsets = [0, 32], sizes = [2, 32], strides = [1, 1]} : vector<2x128xf32> to vector<2x32xf32>
    %193 = arith.negf %192 : vector<2x32xf32>
    %194 = math.exp %193 : vector<2x32xf32>
    %cst_60 = arith.constant 1.000000e+00 : f32
    %195 = vector.broadcast %cst_60 : f32 to vector<2x32xf32>
    %196 = arith.addf %195, %194 : vector<2x32xf32>
    %197 = arith.divf %195, %196 : vector<2x32xf32>
    %198 = vector.extract_strided_slice %185 {offsets = [0, 64], sizes = [2, 32], strides = [1, 1]} : vector<2x128xf32> to vector<2x32xf32>
    %199 = math.tanh %198 : vector<2x32xf32>
    %200 = vector.extract_strided_slice %185 {offsets = [0, 96], sizes = [2, 32], strides = [1, 1]} : vector<2x128xf32> to vector<2x32xf32>
    %201 = arith.negf %200 : vector<2x32xf32>
    %202 = math.exp %201 : vector<2x32xf32>
    %cst_61 = arith.constant 1.000000e+00 : f32
    %203 = vector.broadcast %cst_61 : f32 to vector<2x32xf32>
    %204 = arith.addf %203, %202 : vector<2x32xf32>
    %205 = arith.divf %203, %204 : vector<2x32xf32>
    %206 = arith.mulf %197, %173 : vector<2x32xf32>
    %207 = arith.mulf %191, %199 : vector<2x32xf32>
    %208 = arith.addf %206, %207 : vector<2x32xf32>
    %209 = math.tanh %208 : vector<2x32xf32>
    %210 = arith.mulf %205, %209 : vector<2x32xf32>
    %211 = arith.index_cast %c5_i32 : i32 to index
    %c0_62 = arith.constant 0 : index
    %c0_63 = arith.constant 0 : index
    %212 = vector.load %arg3[%211, %c0_62, %c0_63] : memref<8x2x32xf32, #tpu.memory_space<vmem>>, vector<1x2x32xf32>
    %213 = vector.shape_cast %212 : vector<1x2x32xf32> to vector<2x32xf32>
    %214 = vector.shape_cast %210 : vector<2x32xf32> to vector<1x2x32xf32>
    tpu.vector_store %arg3[%211, %c0_62, %c0_63], %214 {strides = array<i32>} : memref<8x2x32xf32, #tpu.memory_space<vmem>>, vector<1x2x32xf32>,
    %c6_i32 = arith.constant 6 : i32
    %215 = arith.index_cast %c6_i32 : i32 to index
    %c0_64 = arith.constant 0 : index
    %c0_65 = arith.constant 0 : index
    %216 = vector.load %arg1[%215, %c0_64, %c0_65] : memref<8x2x128xf32, #tpu.memory_space<vmem>>, vector<1x2x128xf32>
    %217 = vector.shape_cast %216 : vector<1x2x128xf32> to vector<2x128xf32>
    %c0_66 = arith.constant 0 : index
    %c0_67 = arith.constant 0 : index
    %218 = vector.load %arg2[%c0_66, %c0_67] : memref<32x128xf32, #tpu.memory_space<vmem>>, vector<32x128xf32>
    %cst_68 = arith.constant dense<0.000000e+00> : vector<2x128xf32>
    %219 = tpu.matmul %210, %218, %cst_68 {dimension_numbers = #tpu.dot_dimension_numbers<[1], [0], [0], [1], [0, 0, 1, 1], [], []>} : vector<2x32xf32>, vector<32x128xf32>, vector<2x128xf32> -> vector<2x128xf32>
    %220 = arith.addf %217, %219 : vector<2x128xf32>
    %221 = vector.extract_strided_slice %220 {offsets = [0, 0], sizes = [2, 32], strides = [1, 1]} : vector<2x128xf32> to vector<2x32xf32>
    %222 = arith.negf %221 : vector<2x32xf32>
    %223 = math.exp %222 : vector<2x32xf32>
    %cst_69 = arith.constant 1.000000e+00 : f32
    %224 = vector.broadcast %cst_69 : f32 to vector<2x32xf32>
    %225 = arith.addf %224, %223 : vector<2x32xf32>
    %226 = arith.divf %224, %225 : vector<2x32xf32>
    %227 = vector.extract_strided_slice %220 {offsets = [0, 32], sizes = [2, 32], strides = [1, 1]} : vector<2x128xf32> to vector<2x32xf32>
    %228 = arith.negf %227 : vector<2x32xf32>
    %229 = math.exp %228 : vector<2x32xf32>
    %cst_70 = arith.constant 1.000000e+00 : f32
    %230 = vector.broadcast %cst_70 : f32 to vector<2x32xf32>
    %231 = arith.addf %230, %229 : vector<2x32xf32>
    %232 = arith.divf %230, %231 : vector<2x32xf32>
    %233 = vector.extract_strided_slice %220 {offsets = [0, 64], sizes = [2, 32], strides = [1, 1]} : vector<2x128xf32> to vector<2x32xf32>
    %234 = math.tanh %233 : vector<2x32xf32>
    %235 = vector.extract_strided_slice %220 {offsets = [0, 96], sizes = [2, 32], strides = [1, 1]} : vector<2x128xf32> to vector<2x32xf32>
    %236 = arith.negf %235 : vector<2x32xf32>
    %237 = math.exp %236 : vector<2x32xf32>
    %cst_71 = arith.constant 1.000000e+00 : f32
    %238 = vector.broadcast %cst_71 : f32 to vector<2x32xf32>
    %239 = arith.addf %238, %237 : vector<2x32xf32>
    %240 = arith.divf %238, %239 : vector<2x32xf32>
    %241 = arith.mulf %232, %208 : vector<2x32xf32>
    %242 = arith.mulf %226, %234 : vector<2x32xf32>
    %243 = arith.addf %241, %242 : vector<2x32xf32>
    %244 = math.tanh %243 : vector<2x32xf32>
    %245 = arith.mulf %240, %244 : vector<2x32xf32>
    %246 = arith.index_cast %c6_i32 : i32 to index
    %c0_72 = arith.constant 0 : index
    %c0_73 = arith.constant 0 : index
    %247 = vector.load %arg3[%246, %c0_72, %c0_73] : memref<8x2x32xf32, #tpu.memory_space<vmem>>, vector<1x2x32xf32>
    %248 = vector.shape_cast %247 : vector<1x2x32xf32> to vector<2x32xf32>
    %249 = vector.shape_cast %245 : vector<2x32xf32> to vector<1x2x32xf32>
    tpu.vector_store %arg3[%246, %c0_72, %c0_73], %249 {strides = array<i32>} : memref<8x2x32xf32, #tpu.memory_space<vmem>>, vector<1x2x32xf32>,
    %c7_i32 = arith.constant 7 : i32
    %250 = arith.index_cast %c7_i32 : i32 to index
    %c0_74 = arith.constant 0 : index
    %c0_75 = arith.constant 0 : index
    %251 = vector.load %arg1[%250, %c0_74, %c0_75] : memref<8x2x128xf32, #tpu.memory_space<vmem>>, vector<1x2x128xf32>
    %252 = vector.shape_cast %251 : vector<1x2x128xf32> to vector<2x128xf32>
    %c0_76 = arith.constant 0 : index
    %c0_77 = arith.constant 0 : index
    %253 = vector.load %arg2[%c0_76, %c0_77] : memref<32x128xf32, #tpu.memory_space<vmem>>, vector<32x128xf32>
    %cst_78 = arith.constant dense<0.000000e+00> : vector<2x128xf32>
    %254 = tpu.matmul %245, %253, %cst_78 {dimension_numbers = #tpu.dot_dimension_numbers<[1], [0], [0], [1], [0, 0, 1, 1], [], []>} : vector<2x32xf32>, vector<32x128xf32>, vector<2x128xf32> -> vector<2x128xf32>
    %255 = arith.addf %252, %254 : vector<2x128xf32>
    %256 = vector.extract_strided_slice %255 {offsets = [0, 0], sizes = [2, 32], strides = [1, 1]} : vector<2x128xf32> to vector<2x32xf32>
    %257 = arith.negf %256 : vector<2x32xf32>
    %258 = math.exp %257 : vector<2x32xf32>
    %cst_79 = arith.constant 1.000000e+00 : f32
    %259 = vector.broadcast %cst_79 : f32 to vector<2x32xf32>
    %260 = arith.addf %259, %258 : vector<2x32xf32>
    %261 = arith.divf %259, %260 : vector<2x32xf32>
    %262 = vector.extract_strided_slice %255 {offsets = [0, 32], sizes = [2, 32], strides = [1, 1]} : vector<2x128xf32> to vector<2x32xf32>
    %263 = arith.negf %262 : vector<2x32xf32>
    %264 = math.exp %263 : vector<2x32xf32>
    %cst_80 = arith.constant 1.000000e+00 : f32
    %265 = vector.broadcast %cst_80 : f32 to vector<2x32xf32>
    %266 = arith.addf %265, %264 : vector<2x32xf32>
    %267 = arith.divf %265, %266 : vector<2x32xf32>
    %268 = vector.extract_strided_slice %255 {offsets = [0, 64], sizes = [2, 32], strides = [1, 1]} : vector<2x128xf32> to vector<2x32xf32>
    %269 = math.tanh %268 : vector<2x32xf32>
    %270 = vector.extract_strided_slice %255 {offsets = [0, 96], sizes = [2, 32], strides = [1, 1]} : vector<2x128xf32> to vector<2x32xf32>
    %271 = arith.negf %270 : vector<2x32xf32>
    %272 = math.exp %271 : vector<2x32xf32>
    %cst_81 = arith.constant 1.000000e+00 : f32
    %273 = vector.broadcast %cst_81 : f32 to vector<2x32xf32>
    %274 = arith.addf %273, %272 : vector<2x32xf32>
    %275 = arith.divf %273, %274 : vector<2x32xf32>
    %276 = arith.mulf %267, %243 : vector<2x32xf32>
    %277 = arith.mulf %261, %269 : vector<2x32xf32>
    %278 = arith.addf %276, %277 : vector<2x32xf32>
    %279 = math.tanh %278 : vector<2x32xf32>
    %280 = arith.mulf %275, %279 : vector<2x32xf32>
    %281 = arith.index_cast %c7_i32 : i32 to index
    %c0_82 = arith.constant 0 : index
    %c0_83 = arith.constant 0 : index
    %282 = vector.load %arg3[%281, %c0_82, %c0_83] : memref<8x2x32xf32, #tpu.memory_space<vmem>>, vector<1x2x32xf32>
    %283 = vector.shape_cast %282 : vector<1x2x32xf32> to vector<2x32xf32>
    %284 = vector.shape_cast %280 : vector<2x32xf32> to vector<1x2x32xf32>
    tpu.vector_store %arg3[%281, %c0_82, %c0_83], %284 {strides = array<i32>} : memref<8x2x32xf32, #tpu.memory_space<vmem>>, vector<1x2x32xf32>,
    %c8_i32 = arith.constant 8 : i32
    %c0_84 = arith.constant 0 : index
    %c0_85 = arith.constant 0 : index
    %285 = vector.load %arg4[%c0_84, %c0_85] : memref<2x32xf32, #tpu.memory_space<vmem>>, vector<2x32xf32>
    tpu.vector_store %arg4[%c0_84, %c0_85], %280 {strides = array<i32>} : memref<2x32xf32, #tpu.memory_space<vmem>>, vector<2x32xf32>,
    %c0_86 = arith.constant 0 : index
    %c0_87 = arith.constant 0 : index
    %286 = vector.load %arg5[%c0_86, %c0_87] : memref<2x32xf32, #tpu.memory_space<vmem>>, vector<2x32xf32>
    tpu.vector_store %arg5[%c0_86, %c0_87], %278 {strides = array<i32>} : memref<2x32xf32, #tpu.memory_space<vmem>>, vector<2x32xf32>,
    return
  }
  func.func @transform_0(%arg0: i32) -> (i32, i32, i32) {
    %c0_i32 = arith.constant 0 : i32
    %c0_i32_0 = arith.constant 0 : i32
    %c0_i32_1 = arith.constant 0 : i32
    return %arg0, %c0_i32, %c0_i32_0 : i32, i32, i32
  }
  func.func @transform_1(%arg0: i32) -> (i32, i32) {
    %c0_i32 = arith.constant 0 : i32
    %c0_i32_0 = arith.constant 0 : i32
    %c0_i32_1 = arith.constant 0 : i32
    return %c0_i32, %c0_i32_0 : i32, i32
  }
  func.func @transform_2(%arg0: i32) -> (i32, i32, i32) {
    %c0_i32 = arith.constant 0 : i32
    %c0_i32_0 = arith.constant 0 : i32
    %c0_i32_1 = arith.constant 0 : i32
    return %arg0, %c0_i32, %c0_i32_0 : i32, i32, i32
  }
}

</mosaic_0001>

<llo_original>
// kernel: _lambda_.3
$region0: #{_lambda_.3}
  #allocation0 [shape = 'u32[]', space=smem, size = 0x4, offset = 0x4, fixed_abs, tag = 'smem constant byte address 0x4 - core index']
  #allocation1 [shape = 'u32[144,128]{1,0:T(1,128)}', space=vmem, size = 0x12000, scoped, tag = 'internal scratch']
  %s0 = inlined_call_operand.vmem [shape: f32[16,32], index: 0, kind: input, shape index: {}]
  %s1 = inlined_call_operand.vmem [shape: f32[32,128], index: 1, kind: input, shape index: {}]
  %s2 = inlined_call_operand.vmem [shape: f32[1,128], index: 2, kind: input, shape index: {}]
  %s3 = inlined_call_operand.vmem [shape: f32[16,128], index: 3, kind: output, shape index: {}]
  %s4 = sld [smem:[#allocation0]]
  $region22: #{_lambda_.3} parent=0
    _
  %s6 = ssub.s32 1, %s4
  %s7 = scalar_select 0, %s6, %s4
  // Predicated region
  $region2: #{_lambda_.3} parent=0 // pred_check
    _
  $region3: #{_lambda_.3} parent=0 // pred_check_branch
    %9 = sbr.rel (0) target = $region5
  $region4: #{_lambda_.3} parent=0 // pred_region
    _
  $region5: #{_lambda_.3} parent=0 // pred_fallthru
    _
  // Predicated region
  $region6: #{_lambda_.3} parent=0 // pred_check
    _
  $region7: #{_lambda_.3} parent=0 // pred_check_branch
    %11 = sbr.rel (0) target = $region9
  $region8: #{_lambda_.3} parent=0 // pred_region
    _
  $region9: #{_lambda_.3} parent=0 // pred_fallthru
    _
  // Predicated region
  $region10: #{_lambda_.3} parent=0 // pred_check
    _
  $region11: #{_lambda_.3} parent=0 // pred_check_branch
    %13 = sbr.rel (0) target = $region13
  $region12: #{_lambda_.3} parent=0 // pred_region
    _
  $region13: #{_lambda_.3} parent=0 // pred_fallthru
    _
  %v14 = vld [vmem:[%s0] sm:$0xff]
  %v15 = vld [vmem:[%s0 + $0x8] sm:$0xff]
  %v16 = vld [vmem:[%s1] sm:$0xff]
  %v17 = vld [vmem:[%s1 + $0x8] sm:$0xff]
  %v18 = vld [vmem:[%s1 + $0x10] sm:$0xff]
  %v19 = vld [vmem:[%s1 + $0x18] sm:$0xff]
  %v20 = vld [vmem:[%s2] sm:$0x1]
  %v22 = vlaneseq
  %v23 = vshrl.u32 %v22, 7
  %v24 = vsub.s32 0, %v23
  %v25 = vrot.slane %v20, %v24
  %vm27 = vcmask 261120
  %v29 = vsel %vm27, %v14, 0
  %v32 = vsel %vm27, %v15, 0
  %34 = vmatprep.subr.mxu0 0.0
  %35 = vmatpush1.msra.mxu0 0.0
  %36 = vmatprep.subr.mxu0 0.0
  %37 = vmatpush1.msra.mxu0 0.0
  %38 = vmatprep.subr.mxu0 0.0
  %39 = vmatpush1.msra.mxu0 0.0
  %40 = vmatprep.subr.mxu0 0.0
  %41 = vmatpush1.msra.mxu0 0.0
  %42 = vmatprep.subr.mxu0 0.0
  %43 = vmatpush1.msra.mxu0 0.0
  %44 = vmatprep.subr.mxu0 0.0
  %45 = vmatpush1.msra.mxu0 0.0
  %46 = vmatprep.subr.mxu0 0.0
  %47 = vmatpush1.msra.mxu0 0.0
  %48 = vmatprep.subr.mxu0 0.0
  %49 = vmatpush1.msra.mxu0 0.0
  %50 = vmatprep.subr.mxu0 0.0
  %51 = vmatpush1.msra.mxu0 0.0
  %52 = vmatprep.subr.mxu0 0.0
  %53 = vmatpush1.msra.mxu0 0.0
  %54 = vmatprep.subr.mxu0 0.0
  %55 = vmatpush1.msra.mxu0 0.0
  %56 = vmatprep.subr.mxu0 0.0
  %57 = vmatpush1.msra.mxu0 0.0
  %58 = vmatprep.subr.mxu0 0.0
  %59 = vmatpush1.msra.mxu0 %v19
  %60 = vmatprep.subr.mxu0 0.0
  %61 = vmatpush1.msra.mxu0 %v18
  %62 = vmatprep.subr.mxu0 0.0
  %63 = vmatpush1.msra.mxu0 %v17
  %64 = vmatprep.subr.mxu0 0.0
  %65 = vmatpush1.msra.mxu0 %v16
  %66 = vmatprep.subr.mxu0 0.0
  %67 = vmatpush2.msra.mxu0 0.0
  %68 = vmatprep.subr.mxu0 0.0
  %69 = vmatpush2.msra.mxu0 0.0
  %70 = vmatprep.subr.mxu0 0.0
  %71 = vmatpush2.msra.mxu0 0.0
  %72 = vmatprep.subr.mxu0 0.0
  %73 = vmatpush2.msra.mxu0 0.0
  %74 = vmatprep.subr.mxu0 0.0
  %75 = vmatpush2.msra.mxu0 0.0
  %76 = vmatprep.subr.mxu0 0.0
  %77 = vmatpush2.msra.mxu0 0.0
  %78 = vmatprep.subr.mxu0 0.0
  %79 = vmatpush2.msra.mxu0 0.0
  %80 = vmatprep.subr.mxu0 0.0
  %81 = vmatpush2.msra.mxu0 0.0
  %82 = vmatprep.subr.mxu0 0.0
  %83 = vmatpush2.msra.mxu0 0.0
  %84 = vmatprep.subr.mxu0 0.0
  %85 = vmatpush2.msra.mxu0 0.0
  %86 = vmatprep.subr.mxu0 0.0
  %87 = vmatpush2.msra.mxu0 0.0
  %88 = vmatprep.subr.mxu0 0.0
  %89 = vmatpush2.msra.mxu0 0.0
  %90 = vmatprep.subr.mxu0 0.0
  %91 = vmatpush2.msra.mxu0 0.0
  %92 = vmatprep.subr.mxu0 0.0
  %93 = vmatpush2.msra.mxu0 0.0
  %94 = vmatprep.subr.mxu0 0.0
  %95 = vmatpush2.msra.mxu0 0.0
  %96 = vmatprep.subr.mxu0 0.0
  %97 = vmatpush2.msra.mxu0 0.0
  %98 = vmatprep.mubr.f32.mxu0 0.0
  %99 = vmatmul.mubr.f32.gmra.mxu0 %v29
  %v100 = vpop.f32.mrf.mxu0
  %v101 = vadd.f32 %v25, %v100
  %v102 = vpop.f32.mrf.mxu0
  %103 = vmatprep.mubr.f32.mxu0 0.0
  %104 = vmatmul.mubr.f32.gmra.mxu0 %v32
  %v105 = vpop.f32.mrf.mxu0
  %v106 = vadd.f32 %v25, %v105
  %v107 = vpop.f32.mrf.mxu0
  %108 = vdwg.mxu0
  %109 = vst [vmem:[%s3] sm:$0xff] %v101
  %110 = vst [vmem:[%s3 + $0x8] sm:$0xff] %v106
  // Predicated region
  $region14: #{_lambda_.3} parent=0 // pred_check
    _
  $region15: #{_lambda_.3} parent=0 // pred_check_branch
    %112 = sbr.rel (0) target = $region17
  $region16: #{_lambda_.3} parent=0 // pred_region
    _
  $region17: #{_lambda_.3} parent=0 // pred_fallthru
    _
  // Predicated region
  $region18: #{_lambda_.3} parent=0 // pred_check
    _
  $region19: #{_lambda_.3} parent=0 // pred_check_branch
    %114 = sbr.rel (0) target = $region21
  $region20: #{_lambda_.3} parent=0 // pred_region
    _
  $region21: #{_lambda_.3} parent=0 // pred_fallthru
    _

// kernel: _lambda_.5
$region0: #{_lambda_.5}
  #allocation0 [shape = 'u32[]', space=smem, size = 0x4, offset = 0x4, fixed_abs, tag = 'smem constant byte address 0x4 - core index']
  #allocation1 [shape = 'u32[144,128]{1,0:T(1,128)}', space=vmem, size = 0x12000, scoped, tag = 'internal scratch']
  %s0 = inlined_call_operand.vmem [shape: f32[16,32], index: 0, kind: input, shape index: {}]
  %s1 = inlined_call_operand.vmem [shape: f32[64,32], index: 1, kind: input, shape index: {}]
  %s2 = inlined_call_operand.vmem [shape: f32[1,64], index: 2, kind: input, shape index: {}]
  %s3 = inlined_call_operand.vmem [shape: f32[16,64], index: 3, kind: output, shape index: {}]
  %s4 = sld [smem:[#allocation0]]
  $region22: #{_lambda_.5} parent=0
    _
  %s6 = ssub.s32 1, %s4
  %s7 = scalar_select 0, %s6, %s4
  // Predicated region
  $region2: #{_lambda_.5} parent=0 // pred_check
    _
  $region3: #{_lambda_.5} parent=0 // pred_check_branch
    %9 = sbr.rel (0) target = $region5
  $region4: #{_lambda_.5} parent=0 // pred_region
    _
  $region5: #{_lambda_.5} parent=0 // pred_fallthru
    _
  // Predicated region
  $region6: #{_lambda_.5} parent=0 // pred_check
    _
  $region7: #{_lambda_.5} parent=0 // pred_check_branch
    %11 = sbr.rel (0) target = $region9
  $region8: #{_lambda_.5} parent=0 // pred_region
    _
  $region9: #{_lambda_.5} parent=0 // pred_fallthru
    _
  // Predicated region
  $region10: #{_lambda_.5} parent=0 // pred_check
    _
  $region11: #{_lambda_.5} parent=0 // pred_check_branch
    %13 = sbr.rel (0) target = $region13
  $region12: #{_lambda_.5} parent=0 // pred_region
    _
  $region13: #{_lambda_.5} parent=0 // pred_fallthru
    _
  %v14 = vld [vmem:[%s0] sm:$0xff]
  %v15 = vld [vmem:[%s0 + $0x8] sm:$0xff]
  %v16 = vld [vmem:[%s1] sm:$0xff]
  %v17 = vld [vmem:[%s1 + $0x8] sm:$0xff]
  %v18 = vld [vmem:[%s1 + $0x10] sm:$0xff]
  %v19 = vld [vmem:[%s1 + $0x18] sm:$0xff]
  %v20 = vld [vmem:[%s1 + $0x20] sm:$0xff]
  %v21 = vld [vmem:[%s1 + $0x28] sm:$0xff]
  %v22 = vld [vmem:[%s1 + $0x30] sm:$0xff]
  %v23 = vld [vmem:[%s1 + $0x38] sm:$0xff]
  %v24 = vld [vmem:[%s2] sm:$0x1]
  %v26 = vlaneseq
  %v27 = vshrl.u32 %v26, 7
  %v28 = vsub.s32 0, %v27
  %v29 = vrot.slane %v24, %v28
  %vm31 = vcmask 261120
  %v33 = vsel %vm31, %v14, 0
  %v36 = vsel %vm31, %v15, 0
  %v39 = vsel %vm31, %v16, 0
  %v42 = vsel %vm31, %v17, 0
  %v45 = vsel %vm31, %v18, 0
  %v48 = vsel %vm31, %v19, 0
  %v51 = vsel %vm31, %v20, 0
  %v54 = vsel %vm31, %v21, 0
  %v57 = vsel %vm31, %v22, 0
  %v60 = vsel %vm31, %v23, 0
  %62 = vmatprep.subr.mxu0 0.0
  %63 = vmatpush1.xpose.msra.mxu0 0.0
  %64 = vmatprep.subr.mxu0 0.0
  %65 = vmatpush1.xpose.msra.mxu0 0.0
  %66 = vmatprep.subr.mxu0 0.0
  %67 = vmatpush1.xpose.msra.mxu0 0.0
  %68 = vmatprep.subr.mxu0 0.0
  %69 = vmatpush1.xpose.msra.mxu0 0.0
  %70 = vmatprep.subr.mxu0 0.0
  %71 = vmatpush1.xpose.msra.mxu0 0.0
  %72 = vmatprep.subr.mxu0 0.0
  %73 = vmatpush1.xpose.msra.mxu0 0.0
  %74 = vmatprep.subr.mxu0 0.0
  %75 = vmatpush1.xpose.msra.mxu0 0.0
  %76 = vmatprep.subr.mxu0 0.0
  %77 = vmatpush1.xpose.msra.mxu0 0.0
  %78 = vmatprep.subr.mxu0 0.0
  %79 = vmatpush1.xpose.msra.mxu0 %v60
  %80 = vmatprep.subr.mxu0 0.0
  %81 = vmatpush1.xpose.msra.mxu0 %v57
  %82 = vmatprep.subr.mxu0 0.0
  %83 = vmatpush1.xpose.msra.mxu0 %v54
  %84 = vmatprep.subr.mxu0 0.0
  %85 = vmatpush1.xpose.msra.mxu0 %v51
  %86 = vmatprep.subr.mxu0 0.0
  %87 = vmatpush1.xpose.msra.mxu0 %v48
  %88 = vmatprep.subr.mxu0 0.0
  %89 = vmatpush1.xpose.msra.mxu0 %v45
  %90 = vmatprep.subr.mxu0 0.0
  %91 = vmatpush1.xpose.msra.mxu0 %v42
  %92 = vmatprep.subr.mxu0 0.0
  %93 = vmatpush1.xpose.msra.mxu0 %v39
  %94 = vmatprep.subr.mxu0 0.0
  %95 = vmatpush2.xpose.msra.mxu0 0.0
  %96 = vmatprep.subr.mxu0 0.0
  %97 = vmatpush2.xpose.msra.mxu0 0.0
  %98 = vmatprep.subr.mxu0 0.0
  %99 = vmatpush2.xpose.msra.mxu0 0.0
  %100 = vmatprep.subr.mxu0 0.0
  %101 = vmatpush2.xpose.msra.mxu0 0.0
  %102 = vmatprep.subr.mxu0 0.0
  %103 = vmatpush2.xpose.msra.mxu0 0.0
  %104 = vmatprep.subr.mxu0 0.0
  %105 = vmatpush2.xpose.msra.mxu0 0.0
  %106 = vmatprep.subr.mxu0 0.0
  %107 = vmatpush2.xpose.msra.mxu0 0.0
  %108 = vmatprep.subr.mxu0 0.0
  %109 = vmatpush2.xpose.msra.mxu0 0.0
  %110 = vmatprep.subr.mxu0 0.0
  %111 = vmatpush2.xpose.msra.mxu0 0.0
  %112 = vmatprep.subr.mxu0 0.0
  %113 = vmatpush2.xpose.msra.mxu0 0.0
  %114 = vmatprep.subr.mxu0 0.0
  %115 = vmatpush2.xpose.msra.mxu0 0.0
  %116 = vmatprep.subr.mxu0 0.0
  %117 = vmatpush2.xpose.msra.mxu0 0.0
  %118 = vmatprep.subr.mxu0 0.0
  %119 = vmatpush2.xpose.msra.mxu0 0.0
  %120 = vmatprep.subr.mxu0 0.0
  %121 = vmatpush2.xpose.msra.mxu0 0.0
  %122 = vmatprep.subr.mxu0 0.0
  %123 = vmatpush2.xpose.msra.mxu0 0.0
  %124 = vmatprep.subr.mxu0 0.0
  %125 = vmatpush2.xpose.msra.mxu0 0.0
  %126 = vmatprep.mubr.f32.mxu0 0.0
  %127 = vmatmul.mubr.f32.gmra.mxu0 %v33
  %v128 = vpop.f32.mrf.mxu0
  %v129 = vadd.f32 %v29, %v128
  %v130 = vpop.f32.mrf.mxu0
  %131 = vmatprep.mubr.f32.mxu0 0.0
  %132 = vmatmul.mubr.f32.gmra.mxu0 %v36
  %v133 = vpop.f32.mrf.mxu0
  %v134 = vadd.f32 %v29, %v133
  %v135 = vpop.f32.mrf.mxu0
  %136 = vdwg.mxu0
  %vm137 = vcmask 523264
  %138 = vst.msk [vmem:[%s3] sm:$0xff] %vm137, %v129
  %139 = vst.msk [vmem:[%s3 + $0x8] sm:$0xff] %vm137, %v134
  // Predicated region
  $region14: #{_lambda_.5} parent=0 // pred_check
    _
  $region15: #{_lambda_.5} parent=0 // pred_check_branch
    %141 = sbr.rel (0) target = $region17
  $region16: #{_lambda_.5} parent=0 // pred_region
    _
  $region17: #{_lambda_.5} parent=0 // pred_fallthru
    _
  // Predicated region
  $region18: #{_lambda_.5} parent=0 // pred_check
    _
  $region19: #{_lambda_.5} parent=0 // pred_check_branch
    %143 = sbr.rel (0) target = $region21
  $region20: #{_lambda_.5} parent=0 // pred_region
    _
  $region21: #{_lambda_.5} parent=0 // pred_fallthru
    _

// kernel: _lambda_.4
$region0: #{_lambda_.4}
  #allocation0 [shape = 'u32[]', space=smem, size = 0x4, offset = 0x4, fixed_abs, tag = 'smem constant byte address 0x4 - core index']
  #allocation1 [shape = 'u32[144,128]{1,0:T(1,128)}', space=vmem, size = 0x12000, scoped, tag = 'internal scratch']
  #allocation2 [shape = 'f32[2,32]{1,0:T(2,128)}', space=vmem, size = 0x400, scoped, tag = 'scratch operand']
  #allocation3 [shape = 'f32[2,32]{1,0:T(2,128)}', space=vmem, size = 0x400, scoped, tag = 'scratch operand']
  %s0 = inlined_call_operand.vmem [shape: f32[8,2,128], index: 0, kind: input, shape index: {}]
  %s1 = inlined_call_operand.vmem [shape: f32[32,128], index: 1, kind: input, shape index: {}]
  %s2 = inlined_call_operand.vmem [shape: f32[8,2,32], index: 2, kind: output, shape index: {}]
  %s3 = sld [smem:[#allocation0]]
  $region22: #{_lambda_.4} parent=0
    _
  %s5 = ssub.s32 1, %s3
  %s6 = scalar_select 0, %s5, %s3
  // Predicated region
  $region2: #{_lambda_.4} parent=0 // pred_check
    _
  $region3: #{_lambda_.4} parent=0 // pred_check_branch
    %8 = sbr.rel (0) target = $region5
  $region4: #{_lambda_.4} parent=0 // pred_region
    _
  $region5: #{_lambda_.4} parent=0 // pred_fallthru
    _
  // Predicated region
  $region6: #{_lambda_.4} parent=0 // pred_check
    _
  $region7: #{_lambda_.4} parent=0 // pred_check_branch
    %10 = sbr.rel (0) target = $region9
  $region8: #{_lambda_.4} parent=0 // pred_region
    _
  $region9: #{_lambda_.4} parent=0 // pred_fallthru
    _
  %p11 = scmp.eq.s32.totalorder 0, 0
  // Predicated region
  $region10: #{_lambda_.4} parent=0 // pred_check
    %p12 = pneg %p11
  $region11: #{_lambda_.4} parent=0 // pred_check_branch
    %14 = sbr.rel (%p12) target = $region13
  $region12: #{_lambda_.4} parent=0 // pred_region
    %vm15 = vcmask 254976
    %16 = vst.msk [vmem:[#allocation2] sm:$0x3] %vm15, 0.0
    %17 = vst.msk [vmem:[#allocation3] sm:$0x3] %vm15, 0.0
  $region13: #{_lambda_.4} parent=0 // pred_fallthru
    _
  %v18 = vld [vmem:[#allocation2] sm:$0x3]
  %v19 = vld [vmem:[#allocation3] sm:$0x3]
  %v20 = vld [vmem:[%s0] sm:$0x3]
  %v21 = vld [vmem:[%s1] sm:$0xff]
  %v22 = vld [vmem:[%s1 + $0x8] sm:$0xff]
  %v23 = vld [vmem:[%s1 + $0x10] sm:$0xff]
  %v24 = vld [vmem:[%s1 + $0x18] sm:$0xff]
  %vm25 = vcmask 261120
  %v27 = vsel %vm25, %v18, 0
  %29 = vmatprep.subr.mxu0 0.0
  %30 = vmatpush1.msra.mxu0 0.0
  %31 = vmatprep.subr.mxu0 0.0
  %32 = vmatpush1.msra.mxu0 0.0
  %33 = vmatprep.subr.mxu0 0.0
  %34 = vmatpush1.msra.mxu0 0.0
  %35 = vmatprep.subr.mxu0 0.0
  %36 = vmatpush1.msra.mxu0 0.0
  %37 = vmatprep.subr.mxu0 0.0
  %38 = vmatpush1.msra.mxu0 0.0
  %39 = vmatprep.subr.mxu0 0.0
  %40 = vmatpush1.msra.mxu0 0.0
  %41 = vmatprep.subr.mxu0 0.0
  %42 = vmatpush1.msra.mxu0 0.0
  %43 = vmatprep.subr.mxu0 0.0
  %44 = vmatpush1.msra.mxu0 0.0
  %45 = vmatprep.subr.mxu0 0.0
  %46 = vmatpush1.msra.mxu0 0.0
  %47 = vmatprep.subr.mxu0 0.0
  %48 = vmatpush1.msra.mxu0 0.0
  %49 = vmatprep.subr.mxu0 0.0
  %50 = vmatpush1.msra.mxu0 0.0
  %51 = vmatprep.subr.mxu0 0.0
  %52 = vmatpush1.msra.mxu0 0.0
  %53 = vmatprep.subr.mxu0 0.0
  %54 = vmatpush1.msra.mxu0 %v24
  %55 = vmatprep.subr.mxu0 0.0
  %56 = vmatpush1.msra.mxu0 %v23
  %57 = vmatprep.subr.mxu0 0.0
  %58 = vmatpush1.msra.mxu0 %v22
  %59 = vmatprep.subr.mxu0 0.0
  %60 = vmatpush1.msra.mxu0 %v21
  %61 = vmatprep.subr.mxu0 0.0
  %62 = vmatpush2.msra.mxu0 0.0
  %63 = vmatprep.subr.mxu0 0.0
  %64 = vmatpush2.msra.mxu0 0.0
  %65 = vmatprep.subr.mxu0 0.0
  %66 = vmatpush2.msra.mxu0 0.0
  %67 = vmatprep.subr.mxu0 0.0
  %68 = vmatpush2.msra.mxu0 0.0
  %69 = vmatprep.subr.mxu0 0.0
  %70 = vmatpush2.msra.mxu0 0.0
  %71 = vmatprep.subr.mxu0 0.0
  %72 = vmatpush2.msra.mxu0 0.0
  %73 = vmatprep.subr.mxu0 0.0
  %74 = vmatpush2.msra.mxu0 0.0
  %75 = vmatprep.subr.mxu0 0.0
  %76 = vmatpush2.msra.mxu0 0.0
  %77 = vmatprep.subr.mxu0 0.0
  %78 = vmatpush2.msra.mxu0 0.0
  %79 = vmatprep.subr.mxu0 0.0
  %80 = vmatpush2.msra.mxu0 0.0
  %81 = vmatprep.subr.mxu0 0.0
  %82 = vmatpush2.msra.mxu0 0.0
  %83 = vmatprep.subr.mxu0 0.0
  %84 = vmatpush2.msra.mxu0 0.0
  %85 = vmatprep.subr.mxu0 0.0
  %86 = vmatpush2.msra.mxu0 0.0
  %87 = vmatprep.subr.mxu0 0.0
  %88 = vmatpush2.msra.mxu0 0.0
  %89 = vmatprep.subr.mxu0 0.0
  %90 = vmatpush2.msra.mxu0 0.0
  %91 = vmatprep.subr.mxu0 0.0
  %92 = vmatpush2.msra.mxu0 0.0
  %93 = vmatprep.mubr.f32.mxu0 0.0
  %94 = vmatmul.mubr.f32.gmra.mxu0 %v27
  %v95 = vpop.f32.mrf.mxu0
  %v96 = vadd.f32 0.0, %v95
  %v97 = vpop.f32.mrf.mxu0
  %98 = vdwg.mxu0
  %v99 = vadd.f32 %v20, %v96
  %v100 = vxor.u32 %v99, 2147483648
  %v101 = vmul.f32 %v100, 1.442695
  %v102 = vpow.pop %v101
  %v103 = vadd.f32 %v102, 1.0
  %v104 = vrcp.pop %v103
  %v105 = vmul.f32 1.0, %v104
  %v106 = vtanh.pop %v99
  %108 = vrot.lane.b32.xlu0 %v19, 32
  %v109 = vpop.permute.xlu0 %108
  %v111 = vmul.f32 %v105, %v109
  %113 = vrot.lane.b32.xlu0 %v106, 64
  %v114 = vpop.permute.xlu0 %113
  %v116 = vmul.f32 %v105, %v114
  %118 = vrot.lane.b32.xlu0 %v116, 32
  %v119 = vpop.permute.xlu0 %118
  %v121 = vadd.f32 %v111, %v119
  %v122 = vtanh.pop %v121
  %124 = vrot.lane.b32.xlu0 %v122, 64
  %v125 = vpop.permute.xlu0 %124
  %v127 = vmul.f32 %v105, %v125
  %129 = vrot.lane.b32.xlu0 %v127, 32
  %v130 = vpop.permute.xlu0 %129
  %vm132 = vcmask 254976
  %133 = vst.msk [vmem:[%s2] sm:$0x3] %vm132, %v130
  %s134 = scalar_lea.vmem %s0, 2
  %v135 = vld [vmem:[%s134] sm:$0x3]
  %v136 = vld [vmem:[%s1] sm:$0xff]
  %v137 = vld [vmem:[%s1 + $0x8] sm:$0xff]
  %v138 = vld [vmem:[%s1 + $0x10] sm:$0xff]
  %v139 = vld [vmem:[%s1 + $0x18] sm:$0xff]
  %v140 = vsel %vm25, %v130, 0
  %142 = vmatprep.subr.mxu0 0.0
  %143 = vmatpush1.msra.mxu0 0.0
  %144 = vmatprep.subr.mxu0 0.0
  %145 = vmatpush1.msra.mxu0 0.0
  %146 = vmatprep.subr.mxu0 0.0
  %147 = vmatpush1.msra.mxu0 0.0
  %148 = vmatprep.subr.mxu0 0.0
  %149 = vmatpush1.msra.mxu0 0.0
  %150 = vmatprep.subr.mxu0 0.0
  %151 = vmatpush1.msra.mxu0 0.0
  %152 = vmatprep.subr.mxu0 0.0
  %153 = vmatpush1.msra.mxu0 0.0
  %154 = vmatprep.subr.mxu0 0.0
  %155 = vmatpush1.msra.mxu0 0.0
  %156 = vmatprep.subr.mxu0 0.0
  %157 = vmatpush1.msra.mxu0 0.0
  %158 = vmatprep.subr.mxu0 0.0
  %159 = vmatpush1.msra.mxu0 0.0
  %160 = vmatprep.subr.mxu0 0.0
  %161 = vmatpush1.msra.mxu0 0.0
  %162 = vmatprep.subr.mxu0 0.0
  %163 = vmatpush1.msra.mxu0 0.0
  %164 = vmatprep.subr.mxu0 0.0
  %165 = vmatpush1.msra.mxu0 0.0
  %166 = vmatprep.subr.mxu0 0.0
  %167 = vmatpush1.msra.mxu0 %v139
  %168 = vmatprep.subr.mxu0 0.0
  %169 = vmatpush1.msra.mxu0 %v138
  %170 = vmatprep.subr.mxu0 0.0
  %171 = vmatpush1.msra.mxu0 %v137
  %172 = vmatprep.subr.mxu0 0.0
  %173 = vmatpush1.msra.mxu0 %v136
  %174 = vmatprep.subr.mxu0 0.0
  %175 = vmatpush2.msra.mxu0 0.0
  %176 = vmatprep.subr.mxu0 0.0
  %177 = vmatpush2.msra.mxu0 0.0
  %178 = vmatprep.subr.mxu0 0.0
  %179 = vmatpush2.msra.mxu0 0.0
  %180 = vmatprep.subr.mxu0 0.0
  %181 = vmatpush2.msra.mxu0 0.0
  %182 = vmatprep.subr.mxu0 0.0
  %183 = vmatpush2.msra.mxu0 0.0
  %184 = vmatprep.subr.mxu0 0.0
  %185 = vmatpush2.msra.mxu0 0.0
  %186 = vmatprep.subr.mxu0 0.0
  %187 = vmatpush2.msra.mxu0 0.0
  %188 = vmatprep.subr.mxu0 0.0
  %189 = vmatpush2.msra.mxu0 0.0
  %190 = vmatprep.subr.mxu0 0.0
  %191 = vmatpush2.msra.mxu0 0.0
  %192 = vmatprep.subr.mxu0 0.0
  %193 = vmatpush2.msra.mxu0 0.0
  %194 = vmatprep.subr.mxu0 0.0
  %195 = vmatpush2.msra.mxu0 0.0
  %196 = vmatprep.subr.mxu0 0.0
  %197 = vmatpush2.msra.mxu0 0.0
  %198 = vmatprep.subr.mxu0 0.0
  %199 = vmatpush2.msra.mxu0 0.0
  %200 = vmatprep.subr.mxu0 0.0
  %201 = vmatpush2.msra.mxu0 0.0
  %202 = vmatprep.subr.mxu0 0.0
  %203 = vmatpush2.msra.mxu0 0.0
  %204 = vmatprep.subr.mxu0 0.0
  %205 = vmatpush2.msra.mxu0 0.0
  %206 = vmatprep.mubr.f32.mxu0 0.0
  %207 = vmatmul.mubr.f32.gmra.mxu0 %v140
  %v208 = vpop.f32.mrf.mxu0
  %v209 = vadd.f32 0.0, %v208
  %v210 = vpop.f32.mrf.mxu0
  %211 = vdwg.mxu0
  %v212 = vadd.f32 %v135, %v209
  %v213 = vxor.u32 %v212, 2147483648
  %v214 = vmul.f32 %v213, 1.442695
  %v215 = vpow.pop %v214
  %v216 = vadd.f32 %v215, 1.0
  %v217 = vrcp.pop %v216
  %v218 = vmul.f32 1.0, %v217
  %v219 = vtanh.pop %v212
  %v220 = vmul.f32 %v218, %v121
  %222 = vrot.lane.b32.xlu0 %v219, 64
  %v223 = vpop.permute.xlu0 %222
  %v225 = vmul.f32 %v218, %v223
  %227 = vrot.lane.b32.xlu0 %v225, 32
  %v228 = vpop.permute.xlu0 %227
  %v230 = vadd.f32 %v220, %v228
  %v231 = vtanh.pop %v230
  %233 = vrot.lane.b32.xlu0 %v231, 64
  %v234 = vpop.permute.xlu0 %233
  %v236 = vmul.f32 %v218, %v234
  %238 = vrot.lane.b32.xlu0 %v236, 32
  %v239 = vpop.permute.xlu0 %238
  %s241 = scalar_lea.vmem %s2, 2
  %242 = vst.msk [vmem:[%s241] sm:$0x3] %vm132, %v239
  %s243 = scalar_lea.vmem %s0, 4
  %v244 = vld [vmem:[%s243] sm:$0x3]
  %v245 = vld [vmem:[%s1] sm:$0xff]
  %v246 = vld [vmem:[%s1 + $0x8] sm:$0xff]
  %v247 = vld [vmem:[%s1 + $0x10] sm:$0xff]
  %v248 = vld [vmem:[%s1 + $0x18] sm:$0xff]
  %v249 = vsel %vm25, %v239, 0
  %251 = vmatprep.subr.mxu0 0.0
  %252 = vmatpush1.msra.mxu0 0.0
  %253 = vmatprep.subr.mxu0 0.0
  %254 = vmatpush1.msra.mxu0 0.0
  %255 = vmatprep.subr.mxu0 0.0
  %256 = vmatpush1.msra.mxu0 0.0
  %257 = vmatprep.subr.mxu0 0.0
  %258 = vmatpush1.msra.mxu0 0.0
  %259 = vmatprep.subr.mxu0 0.0
  %260 = vmatpush1.msra.mxu0 0.0
  %261 = vmatprep.subr.mxu0 0.0
  %262 = vmatpush1.msra.mxu0 0.0
  %263 = vmatprep.subr.mxu0 0.0
  %264 = vmatpush1.msra.mxu0 0.0
  %265 = vmatprep.subr.mxu0 0.0
  %266 = vmatpush1.msra.mxu0 0.0
  %267 = vmatprep.subr.mxu0 0.0
  %268 = vmatpush1.msra.mxu0 0.0
  %269 = vmatprep.subr.mxu0 0.0
  %270 = vmatpush1.msra.mxu0 0.0
  %271 = vmatprep.subr.mxu0 0.0
  %272 = vmatpush1.msra.mxu0 0.0
  %273 = vmatprep.subr.mxu0 0.0
  %274 = vmatpush1.msra.mxu0 0.0
  %275 = vmatprep.subr.mxu0 0.0
  %276 = vmatpush1.msra.mxu0 %v248
  %277 = vmatprep.subr.mxu0 0.0
  %278 = vmatpush1.msra.mxu0 %v247
  %279 = vmatprep.subr.mxu0 0.0
  %280 = vmatpush1.msra.mxu0 %v246
  %281 = vmatprep.subr.mxu0 0.0
  %282 = vmatpush1.msra.mxu0 %v245
  %283 = vmatprep.subr.mxu0 0.0
  %284 = vmatpush2.msra.mxu0 0.0
  %285 = vmatprep.subr.mxu0 0.0
  %286 = vmatpush2.msra.mxu0 0.0
  %287 = vmatprep.subr.mxu0 0.0
  %288 = vmatpush2.msra.mxu0 0.0
  %289 = vmatprep.subr.mxu0 0.0
  %290 = vmatpush2.msra.mxu0 0.0
  %291 = vmatprep.subr.mxu0 0.0
  %292 = vmatpush2.msra.mxu0 0.0
  %293 = vmatprep.subr.mxu0 0.0
  %294 = vmatpush2.msra.mxu0 0.0
  %295 = vmatprep.subr.mxu0 0.0
  %296 = vmatpush2.msra.mxu0 0.0
  %297 = vmatprep.subr.mxu0 0.0
  %298 = vmatpush2.msra.mxu0 0.0
  %299 = vmatprep.subr.mxu0 0.0
  %300 = vmatpush2.msra.mxu0 0.0
  %301 = vmatprep.subr.mxu0 0.0
  %302 = vmatpush2.msra.mxu0 0.0
  %303 = vmatprep.subr.mxu0 0.0
  %304 = vmatpush2.msra.mxu0 0.0
  %305 = vmatprep.subr.mxu0 0.0
  %306 = vmatpush2.msra.mxu0 0.0
  %307 = vmatprep.subr.mxu0 0.0
  %308 = vmatpush2.msra.mxu0 0.0
  %309 = vmatprep.subr.mxu0 0.0
  %310 = vmatpush2.msra.mxu0 0.0
  %311 = vmatprep.subr.mxu0 0.0
  %312 = vmatpush2.msra.mxu0 0.0
  %313 = vmatprep.subr.mxu0 0.0
  %314 = vmatpush2.msra.mxu0 0.0
  %315 = vmatprep.mubr.f32.mxu0 0.0
  %316 = vmatmul.mubr.f32.gmra.mxu0 %v249
  %v317 = vpop.f32.mrf.mxu0
  %v318 = vadd.f32 0.0, %v317
  %v319 = vpop.f32.mrf.mxu0
  %320 = vdwg.mxu0
  %v321 = vadd.f32 %v244, %v318
  %v322 = vxor.u32 %v321, 2147483648
  %v323 = vmul.f32 %v322, 1.442695
  %v324 = vpow.pop %v323
  %v325 = vadd.f32 %v324, 1.0
  %v326 = vrcp.pop %v325
  %v327 = vmul.f32 1.0, %v326
  %v328 = vtanh.pop %v321
  %v329 = vmul.f32 %v327, %v230
  %331 = vrot.lane.b32.xlu0 %v328, 64
  %v332 = vpop.permute.xlu0 %331
  %v334 = vmul.f32 %v327, %v332
  %336 = vrot.lane.b32.xlu0 %v334, 32
  %v337 = vpop.permute.xlu0 %336
  %v339 = vadd.f32 %v329, %v337
  %v340 = vtanh.pop %v339
  %342 = vrot.lane.b32.xlu0 %v340, 64
  %v343 = vpop.permute.xlu0 %342
  %v345 = vmul.f32 %v327, %v343
  %347 = vrot.lane.b32.xlu0 %v345, 32
  %v348 = vpop.permute.xlu0 %347
  %s350 = scalar_lea.vmem %s2, 4
  %351 = vst.msk [vmem:[%s350] sm:$0x3] %vm132, %v348
  %s352 = scalar_lea.vmem %s0, 6
  %v353 = vld [vmem:[%s352] sm:$0x3]
  %v354 = vld [vmem:[%s1] sm:$0xff]
  %v355 = vld [vmem:[%s1 + $0x8] sm:$0xff]
  %v356 = vld [vmem:[%s1 + $0x10] sm:$0xff]
  %v357 = vld [vmem:[%s1 + $0x18] sm:$0xff]
  %v358 = vsel %vm25, %v348, 0
  %360 = vmatprep.subr.mxu0 0.0
  %361 = vmatpush1.msra.mxu0 0.0
  %362 = vmatprep.subr.mxu0 0.0
  %363 = vmatpush1.msra.mxu0 0.0
  %364 = vmatprep.subr.mxu0 0.0
  %365 = vmatpush1.msra.mxu0 0.0
  %366 = vmatprep.subr.mxu0 0.0
  %367 = vmatpush1.msra.mxu0 0.0
  %368 = vmatprep.subr.mxu0 0.0
  %369 = vmatpush1.msra.mxu0 0.0
  %370 = vmatprep.subr.mxu0 0.0
  %371 = vmatpush1.msra.mxu0 0.0
  %372 = vmatprep.subr.mxu0 0.0
  %373 = vmatpush1.msra.mxu0 0.0
  %374 = vmatprep.subr.mxu0 0.0
  %375 = vmatpush1.msra.mxu0 0.0
  %376 = vmatprep.subr.mxu0 0.0
  %377 = vmatpush1.msra.mxu0 0.0
  %378 = vmatprep.subr.mxu0 0.0
  %379 = vmatpush1.msra.mxu0 0.0
  %380 = vmatprep.subr.mxu0 0.0
  %381 = vmatpush1.msra.mxu0 0.0
  %382 = vmatprep.subr.mxu0 0.0
  %383 = vmatpush1.msra.mxu0 0.0
  %384 = vmatprep.subr.mxu0 0.0
  %385 = vmatpush1.msra.mxu0 %v357
  %386 = vmatprep.subr.mxu0 0.0
  %387 = vmatpush1.msra.mxu0 %v356
  %388 = vmatprep.subr.mxu0 0.0
  %389 = vmatpush1.msra.mxu0 %v355
  %390 = vmatprep.subr.mxu0 0.0
  %391 = vmatpush1.msra.mxu0 %v354
  %392 = vmatprep.subr.mxu0 0.0
  %393 = vmatpush2.msra.mxu0 0.0
  %394 = vmatprep.subr.mxu0 0.0
  %395 = vmatpush2.msra.mxu0 0.0
  %396 = vmatprep.subr.mxu0 0.0
  %397 = vmatpush2.msra.mxu0 0.0
  %398 = vmatprep.subr.mxu0 0.0
  %399 = vmatpush2.msra.mxu0 0.0
  %400 = vmatprep.subr.mxu0 0.0
  %401 = vmatpush2.msra.mxu0 0.0
  %402 = vmatprep.subr.mxu0 0.0
  %403 = vmatpush2.msra.mxu0 0.0
  %404 = vmatprep.subr.mxu0 0.0
  %405 = vmatpush2.msra.mxu0 0.0
  %406 = vmatprep.subr.mxu0 0.0
  %407 = vmatpush2.msra.mxu0 0.0
  %408 = vmatprep.subr.mxu0 0.0
  %409 = vmatpush2.msra.mxu0 0.0
  %410 = vmatprep.subr.mxu0 0.0
  %411 = vmatpush2.msra.mxu0 0.0
  %412 = vmatprep.subr.mxu0 0.0
  %413 = vmatpush2.msra.mxu0 0.0
  %414 = vmatprep.subr.mxu0 0.0
  %415 = vmatpush2.msra.mxu0 0.0
  %416 = vmatprep.subr.mxu0 0.0
  %417 = vmatpush2.msra.mxu0 0.0
  %418 = vmatprep.subr.mxu0 0.0
  %419 = vmatpush2.msra.mxu0 0.0
  %420 = vmatprep.subr.mxu0 0.0
  %421 = vmatpush2.msra.mxu0 0.0
  %422 = vmatprep.subr.mxu0 0.0
  %423 = vmatpush2.msra.mxu0 0.0
  %424 = vmatprep.mubr.f32.mxu0 0.0
  %425 = vmatmul.mubr.f32.gmra.mxu0 %v358
  %v426 = vpop.f32.mrf.mxu0
  %v427 = vadd.f32 0.0, %v426
  %v428 = vpop.f32.mrf.mxu0
  %429 = vdwg.mxu0
  %v430 = vadd.f32 %v353, %v427
  %v431 = vxor.u32 %v430, 2147483648
  %v432 = vmul.f32 %v431, 1.442695
  %v433 = vpow.pop %v432
  %v434 = vadd.f32 %v433, 1.0
  %v435 = vrcp.pop %v434
  %v436 = vmul.f32 1.0, %v435
  %v437 = vtanh.pop %v430
  %v438 = vmul.f32 %v436, %v339
  %440 = vrot.lane.b32.xlu0 %v437, 64
  %v441 = vpop.permute.xlu0 %440
  %v443 = vmul.f32 %v436, %v441
  %445 = vrot.lane.b32.xlu0 %v443, 32
  %v446 = vpop.permute.xlu0 %445
  %v448 = vadd.f32 %v438, %v446
  %v449 = vtanh.pop %v448
  %451 = vrot.lane.b32.xlu0 %v449, 64
  %v452 = vpop.permute.xlu0 %451
  %v454 = vmul.f32 %v436, %v452
  %456 = vrot.lane.b32.xlu0 %v454, 32
  %v457 = vpop.permute.xlu0 %456
  %s459 = scalar_lea.vmem %s2, 6
  %460 = vst.msk [vmem:[%s459] sm:$0x3] %vm132, %v457
  %s461 = scalar_lea.vmem %s0, 8
  %v462 = vld [vmem:[%s461] sm:$0x3]
  %v463 = vld [vmem:[%s1] sm:$0xff]
  %v464 = vld [vmem:[%s1 + $0x8] sm:$0xff]
  %v465 = vld [vmem:[%s1 + $0x10] sm:$0xff]
  %v466 = vld [vmem:[%s1 + $0x18] sm:$0xff]
  %v467 = vsel %vm25, %v457, 0
  %469 = vmatprep.subr.mxu0 0.0
  %470 = vmatpush1.msra.mxu0 0.0
  %471 = vmatprep.subr.mxu0 0.0
  %472 = vmatpush1.msra.mxu0 0.0
  %473 = vmatprep.subr.mxu0 0.0
  %474 = vmatpush1.msra.mxu0 0.0
  %475 = vmatprep.subr.mxu0 0.0
  %476 = vmatpush1.msra.mxu0 0.0
  %477 = vmatprep.subr.mxu0 0.0
  %478 = vmatpush1.msra.mxu0 0.0
  %479 = vmatprep.subr.mxu0 0.0
  %480 = vmatpush1.msra.mxu0 0.0
  %481 = vmatprep.subr.mxu0 0.0
  %482 = vmatpush1.msra.mxu0 0.0
  %483 = vmatprep.subr.mxu0 0.0
  %484 = vmatpush1.msra.mxu0 0.0
  %485 = vmatprep.subr.mxu0 0.0
  %486 = vmatpush1.msra.mxu0 0.0
  %487 = vmatprep.subr.mxu0 0.0
  %488 = vmatpush1.msra.mxu0 0.0
  %489 = vmatprep.subr.mxu0 0.0
  %490 = vmatpush1.msra.mxu0 0.0
  %491 = vmatprep.subr.mxu0 0.0
  %492 = vmatpush1.msra.mxu0 0.0
  %493 = vmatprep.subr.mxu0 0.0
  %494 = vmatpush1.msra.mxu0 %v466
  %495 = vmatprep.subr.mxu0 0.0
  %496 = vmatpush1.msra.mxu0 %v465
  %497 = vmatprep.subr.mxu0 0.0
  %498 = vmatpush1.msra.mxu0 %v464
  %499 = vmatprep.subr.mxu0 0.0
  %500 = vmatpush1.msra.mxu0 %v463
  %501 = vmatprep.subr.mxu0 0.0
  %502 = vmatpush2.msra.mxu0 0.0
  %503 = vmatprep.subr.mxu0 0.0
  %504 = vmatpush2.msra.mxu0 0.0
  %505 = vmatprep.subr.mxu0 0.0
  %506 = vmatpush2.msra.mxu0 0.0
  %507 = vmatprep.subr.mxu0 0.0
  %508 = vmatpush2.msra.mxu0 0.0
  %509 = vmatprep.subr.mxu0 0.0
  %510 = vmatpush2.msra.mxu0 0.0
  %511 = vmatprep.subr.mxu0 0.0
  %512 = vmatpush2.msra.mxu0 0.0
  %513 = vmatprep.subr.mxu0 0.0
  %514 = vmatpush2.msra.mxu0 0.0
  %515 = vmatprep.subr.mxu0 0.0
  %516 = vmatpush2.msra.mxu0 0.0
  %517 = vmatprep.subr.mxu0 0.0
  %518 = vmatpush2.msra.mxu0 0.0
  %519 = vmatprep.subr.mxu0 0.0
  %520 = vmatpush2.msra.mxu0 0.0
  %521 = vmatprep.subr.mxu0 0.0
  %522 = vmatpush2.msra.mxu0 0.0
  %523 = vmatprep.subr.mxu0 0.0
  %524 = vmatpush2.msra.mxu0 0.0
  %525 = vmatprep.subr.mxu0 0.0
  %526 = vmatpush2.msra.mxu0 0.0
  %527 = vmatprep.subr.mxu0 0.0
  %528 = vmatpush2.msra.mxu0 0.0
  %529 = vmatprep.subr.mxu0 0.0
  %530 = vmatpush2.msra.mxu0 0.0
  %531 = vmatprep.subr.mxu0 0.0
  %532 = vmatpush2.msra.mxu0 0.0
  %533 = vmatprep.mubr.f32.mxu0 0.0
  %534 = vmatmul.mubr.f32.gmra.mxu0 %v467
  %v535 = vpop.f32.mrf.mxu0
  %v536 = vadd.f32 0.0, %v535
  %v537 = vpop.f32.mrf.mxu0
  %538 = vdwg.mxu0
  %v539 = vadd.f32 %v462, %v536
  %v540 = vxor.u32 %v539, 2147483648
  %v541 = vmul.f32 %v540, 1.442695
  %v542 = vpow.pop %v541
  %v543 = vadd.f32 %v542, 1.0
  %v544 = vrcp.pop %v543
  %v545 = vmul.f32 1.0, %v544
  %v546 = vtanh.pop %v539
  %v547 = vmul.f32 %v545, %v448
  %549 = vrot.lane.b32.xlu0 %v546, 64
  %v550 = vpop.permute.xlu0 %549
  %v552 = vmul.f32 %v545, %v550
  %554 = vrot.lane.b32.xlu0 %v552, 32
  %v555 = vpop.permute.xlu0 %554
  %v557 = vadd.f32 %v547, %v555
  %v558 = vtanh.pop %v557
  %560 = vrot.lane.b32.xlu0 %v558, 64
  %v561 = vpop.permute.xlu0 %560
  %v563 = vmul.f32 %v545, %v561
  %565 = vrot.lane.b32.xlu0 %v563, 32
  %v566 = vpop.permute.xlu0 %565
  %s568 = scalar_lea.vmem %s2, 8
  %569 = vst.msk [vmem:[%s568] sm:$0x3] %vm132, %v566
  %s570 = scalar_lea.vmem %s0, 10
  %v571 = vld [vmem:[%s570] sm:$0x3]
  %v572 = vld [vmem:[%s1] sm:$0xff]
  %v573 = vld [vmem:[%s1 + $0x8] sm:$0xff]
  %v574 = vld [vmem:[%s1 + $0x10] sm:$0xff]
  %v575 = vld [vmem:[%s1 + $0x18] sm:$0xff]
  %v576 = vsel %vm25, %v566, 0
  %578 = vmatprep.subr.mxu0 0.0
  %579 = vmatpush1.msra.mxu0 0.0
  %580 = vmatprep.subr.mxu0 0.0
  %581 = vmatpush1.msra.mxu0 0.0
  %582 = vmatprep.subr.mxu0 0.0
  %583 = vmatpush1.msra.mxu0 0.0
  %584 = vmatprep.subr.mxu0 0.0
  %585 = vmatpush1.msra.mxu0 0.0
  %586 = vmatprep.subr.mxu0 0.0
  %587 = vmatpush1.msra.mxu0 0.0
  %588 = vmatprep.subr.mxu0 0.0
  %589 = vmatpush1.msra.mxu0 0.0
  %590 = vmatprep.subr.mxu0 0.0
  %591 = vmatpush1.msra.mxu0 0.0
  %592 = vmatprep.subr.mxu0 0.0
  %593 = vmatpush1.msra.mxu0 0.0
  %594 = vmatprep.subr.mxu0 0.0
  %595 = vmatpush1.msra.mxu0 0.0
  %596 = vmatprep.subr.mxu0 0.0
  %597 = vmatpush1.msra.mxu0 0.0
  %598 = vmatprep.subr.mxu0 0.0
  %599 = vmatpush1.msra.mxu0 0.0
  %600 = vmatprep.subr.mxu0 0.0
  %601 = vmatpush1.msra.mxu0 0.0
  %602 = vmatprep.subr.mxu0 0.0
  %603 = vmatpush1.msra.mxu0 %v575
  %604 = vmatprep.subr.mxu0 0.0
  %605 = vmatpush1.msra.mxu0 %v574
  %606 = vmatprep.subr.mxu0 0.0
  %607 = vmatpush1.msra.mxu0 %v573
  %608 = vmatprep.subr.mxu0 0.0
  %609 = vmatpush1.msra.mxu0 %v572
  %610 = vmatprep.subr.mxu0 0.0
  %611 = vmatpush2.msra.mxu0 0.0
  %612 = vmatprep.subr.mxu0 0.0
  %613 = vmatpush2.msra.mxu0 0.0
  %614 = vmatprep.subr.mxu0 0.0
  %615 = vmatpush2.msra.mxu0 0.0
  %616 = vmatprep.subr.mxu0 0.0
  %617 = vmatpush2.msra.mxu0 0.0
  %618 = vmatprep.subr.mxu0 0.0
  %619 = vmatpush2.msra.mxu0 0.0
  %620 = vmatprep.subr.mxu0 0.0
  %621 = vmatpush2.msra.mxu0 0.0
  %622 = vmatprep.subr.mxu0 0.0
  %623 = vmatpush2.msra.mxu0 0.0
  %624 = vmatprep.subr.mxu0 0.0
  %625 = vmatpush2.msra.mxu0 0.0
  %626 = vmatprep.subr.mxu0 0.0
  %627 = vmatpush2.msra.mxu0 0.0
  %628 = vmatprep.subr.mxu0 0.0
  %629 = vmatpush2.msra.mxu0 0.0
  %630 = vmatprep.subr.mxu0 0.0
  %631 = vmatpush2.msra.mxu0 0.0
  %632 = vmatprep.subr.mxu0 0.0
  %633 = vmatpush2.msra.mxu0 0.0
  %634 = vmatprep.subr.mxu0 0.0
  %635 = vmatpush2.msra.mxu0 0.0
  %636 = vmatprep.subr.mxu0 0.0
  %637 = vmatpush2.msra.mxu0 0.0
  %638 = vmatprep.subr.mxu0 0.0
  %639 = vmatpush2.msra.mxu0 0.0
  %640 = vmatprep.subr.mxu0 0.0
  %641 = vmatpush2.msra.mxu0 0.0
  %642 = vmatprep.mubr.f32.mxu0 0.0
  %643 = vmatmul.mubr.f32.gmra.mxu0 %v576
  %v644 = vpop.f32.mrf.mxu0
  %v645 = vadd.f32 0.0, %v644
  %v646 = vpop.f32.mrf.mxu0
  %647 = vdwg.mxu0
  %v648 = vadd.f32 %v571, %v645
  %v649 = vxor.u32 %v648, 2147483648
  %v650 = vmul.f32 %v649, 1.442695
  %v651 = vpow.pop %v650
  %v652 = vadd.f32 %v651, 1.0
  %v653 = vrcp.pop %v652
  %v654 = vmul.f32 1.0, %v653
  %v655 = vtanh.pop %v648
  %v656 = vmul.f32 %v654, %v557
  %658 = vrot.lane.b32.xlu0 %v655, 64
  %v659 = vpop.permute.xlu0 %658
  %v661 = vmul.f32 %v654, %v659
  %663 = vrot.lane.b32.xlu0 %v661, 32
  %v664 = vpop.permute.xlu0 %663
  %v666 = vadd.f32 %v656, %v664
  %v667 = vtanh.pop %v666
  %669 = vrot.lane.b32.xlu0 %v667, 64
  %v670 = vpop.permute.xlu0 %669
  %v672 = vmul.f32 %v654, %v670
  %674 = vrot.lane.b32.xlu0 %v672, 32
  %v675 = vpop.permute.xlu0 %674
  %s677 = scalar_lea.vmem %s2, 10
  %678 = vst.msk [vmem:[%s677] sm:$0x3] %vm132, %v675
  %s679 = scalar_lea.vmem %s0, 12
  %v680 = vld [vmem:[%s679] sm:$0x3]
  %v681 = vld [vmem:[%s1] sm:$0xff]
  %v682 = vld [vmem:[%s1 + $0x8] sm:$0xff]
  %v683 = vld [vmem:[%s1 + $0x10] sm:$0xff]
  %v684 = vld [vmem:[%s1 + $0x18] sm:$0xff]
  %v685 = vsel %vm25, %v675, 0
  %687 = vmatprep.subr.mxu0 0.0
  %688 = vmatpush1.msra.mxu0 0.0
  %689 = vmatprep.subr.mxu0 0.0
  %690 = vmatpush1.msra.mxu0 0.0
  %691 = vmatprep.subr.mxu0 0.0
  %692 = vmatpush1.msra.mxu0 0.0
  %693 = vmatprep.subr.mxu0 0.0
  %694 = vmatpush1.msra.mxu0 0.0
  %695 = vmatprep.subr.mxu0 0.0
  %696 = vmatpush1.msra.mxu0 0.0
  %697 = vmatprep.subr.mxu0 0.0
  %698 = vmatpush1.msra.mxu0 0.0
  %699 = vmatprep.subr.mxu0 0.0
  %700 = vmatpush1.msra.mxu0 0.0
  %701 = vmatprep.subr.mxu0 0.0
  %702 = vmatpush1.msra.mxu0 0.0
  %703 = vmatprep.subr.mxu0 0.0
  %704 = vmatpush1.msra.mxu0 0.0
  %705 = vmatprep.subr.mxu0 0.0
  %706 = vmatpush1.msra.mxu0 0.0
  %707 = vmatprep.subr.mxu0 0.0
  %708 = vmatpush1.msra.mxu0 0.0
  %709 = vmatprep.subr.mxu0 0.0
  %710 = vmatpush1.msra.mxu0 0.0
  %711 = vmatprep.subr.mxu0 0.0
  %712 = vmatpush1.msra.mxu0 %v684
  %713 = vmatprep.subr.mxu0 0.0
  %714 = vmatpush1.msra.mxu0 %v683
  %715 = vmatprep.subr.mxu0 0.0
  %716 = vmatpush1.msra.mxu0 %v682
  %717 = vmatprep.subr.mxu0 0.0
  %718 = vmatpush1.msra.mxu0 %v681
  %719 = vmatprep.subr.mxu0 0.0
  %720 = vmatpush2.msra.mxu0 0.0
  %721 = vmatprep.subr.mxu0 0.0
  %722 = vmatpush2.msra.mxu0 0.0
  %723 = vmatprep.subr.mxu0 0.0
  %724 = vmatpush2.msra.mxu0 0.0
  %725 = vmatprep.subr.mxu0 0.0
  %726 = vmatpush2.msra.mxu0 0.0
  %727 = vmatprep.subr.mxu0 0.0
  %728 = vmatpush2.msra.mxu0 0.0
  %729 = vmatprep.subr.mxu0 0.0
  %730 = vmatpush2.msra.mxu0 0.0
  %731 = vmatprep.subr.mxu0 0.0
  %732 = vmatpush2.msra.mxu0 0.0
  %733 = vmatprep.subr.mxu0 0.0
  %734 = vmatpush2.msra.mxu0 0.0
  %735 = vmatprep.subr.mxu0 0.0
  %736 = vmatpush2.msra.mxu0 0.0
  %737 = vmatprep.subr.mxu0 0.0
  %738 = vmatpush2.msra.mxu0 0.0
  %739 = vmatprep.subr.mxu0 0.0
  %740 = vmatpush2.msra.mxu0 0.0
  %741 = vmatprep.subr.mxu0 0.0
  %742 = vmatpush2.msra.mxu0 0.0
  %743 = vmatprep.subr.mxu0 0.0
  %744 = vmatpush2.msra.mxu0 0.0
  %745 = vmatprep.subr.mxu0 0.0
  %746 = vmatpush2.msra.mxu0 0.0
  %747 = vmatprep.subr.mxu0 0.0
  %748 = vmatpush2.msra.mxu0 0.0
  %749 = vmatprep.subr.mxu0 0.0
  %750 = vmatpush2.msra.mxu0 0.0
  %751 = vmatprep.mubr.f32.mxu0 0.0
  %752 = vmatmul.mubr.f32.gmra.mxu0 %v685
  %v753 = vpop.f32.mrf.mxu0
  %v754 = vadd.f32 0.0, %v753
  %v755 = vpop.f32.mrf.mxu0
  %756 = vdwg.mxu0
  %v757 = vadd.f32 %v680, %v754
  %v758 = vxor.u32 %v757, 2147483648
  %v759 = vmul.f32 %v758, 1.442695
  %v760 = vpow.pop %v759
  %v761 = vadd.f32 %v760, 1.0
  %v762 = vrcp.pop %v761
  %v763 = vmul.f32 1.0, %v762
  %v764 = vtanh.pop %v757
  %v765 = vmul.f32 %v763, %v666
  %767 = vrot.lane.b32.xlu0 %v764, 64
  %v768 = vpop.permute.xlu0 %767
  %v770 = vmul.f32 %v763, %v768
  %772 = vrot.lane.b32.xlu0 %v770, 32
  %v773 = vpop.permute.xlu0 %772
  %v775 = vadd.f32 %v765, %v773
  %v776 = vtanh.pop %v775
  %778 = vrot.lane.b32.xlu0 %v776, 64
  %v779 = vpop.permute.xlu0 %778
  %v781 = vmul.f32 %v763, %v779
  %783 = vrot.lane.b32.xlu0 %v781, 32
  %v784 = vpop.permute.xlu0 %783
  %s786 = scalar_lea.vmem %s2, 12
  %787 = vst.msk [vmem:[%s786] sm:$0x3] %vm132, %v784
  %s788 = scalar_lea.vmem %s0, 14
  %v789 = vld [vmem:[%s788] sm:$0x3]
  %v790 = vld [vmem:[%s1] sm:$0xff]
  %v791 = vld [vmem:[%s1 + $0x8] sm:$0xff]
  %v792 = vld [vmem:[%s1 + $0x10] sm:$0xff]
  %v793 = vld [vmem:[%s1 + $0x18] sm:$0xff]
  %v794 = vsel %vm25, %v784, 0
  %796 = vmatprep.subr.mxu0 0.0
  %797 = vmatpush1.msra.mxu0 0.0
  %798 = vmatprep.subr.mxu0 0.0
  %799 = vmatpush1.msra.mxu0 0.0
  %800 = vmatprep.subr.mxu0 0.0
  %801 = vmatpush1.msra.mxu0 0.0
  %802 = vmatprep.subr.mxu0 0.0
  %803 = vmatpush1.msra.mxu0 0.0
  %804 = vmatprep.subr.mxu0 0.0
  %805 = vmatpush1.msra.mxu0 0.0
  %806 = vmatprep.subr.mxu0 0.0
  %807 = vmatpush1.msra.mxu0 0.0
  %808 = vmatprep.subr.mxu0 0.0
  %809 = vmatpush1.msra.mxu0 0.0
  %810 = vmatprep.subr.mxu0 0.0
  %811 = vmatpush1.msra.mxu0 0.0
  %812 = vmatprep.subr.mxu0 0.0
  %813 = vmatpush1.msra.mxu0 0.0
  %814 = vmatprep.subr.mxu0 0.0
  %815 = vmatpush1.msra.mxu0 0.0
  %816 = vmatprep.subr.mxu0 0.0
  %817 = vmatpush1.msra.mxu0 0.0
  %818 = vmatprep.subr.mxu0 0.0
  %819 = vmatpush1.msra.mxu0 0.0
  %820 = vmatprep.subr.mxu0 0.0
  %821 = vmatpush1.msra.mxu0 %v793
  %822 = vmatprep.subr.mxu0 0.0
  %823 = vmatpush1.msra.mxu0 %v792
  %824 = vmatprep.subr.mxu0 0.0
  %825 = vmatpush1.msra.mxu0 %v791
  %826 = vmatprep.subr.mxu0 0.0
  %827 = vmatpush1.msra.mxu0 %v790
  %828 = vmatprep.subr.mxu0 0.0
  %829 = vmatpush2.msra.mxu0 0.0
  %830 = vmatprep.subr.mxu0 0.0
  %831 = vmatpush2.msra.mxu0 0.0
  %832 = vmatprep.subr.mxu0 0.0
  %833 = vmatpush2.msra.mxu0 0.0
  %834 = vmatprep.subr.mxu0 0.0
  %835 = vmatpush2.msra.mxu0 0.0
  %836 = vmatprep.subr.mxu0 0.0
  %837 = vmatpush2.msra.mxu0 0.0
  %838 = vmatprep.subr.mxu0 0.0
  %839 = vmatpush2.msra.mxu0 0.0
  %840 = vmatprep.subr.mxu0 0.0
  %841 = vmatpush2.msra.mxu0 0.0
  %842 = vmatprep.subr.mxu0 0.0
  %843 = vmatpush2.msra.mxu0 0.0
  %844 = vmatprep.subr.mxu0 0.0
  %845 = vmatpush2.msra.mxu0 0.0
  %846 = vmatprep.subr.mxu0 0.0
  %847 = vmatpush2.msra.mxu0 0.0
  %848 = vmatprep.subr.mxu0 0.0
  %849 = vmatpush2.msra.mxu0 0.0
  %850 = vmatprep.subr.mxu0 0.0
  %851 = vmatpush2.msra.mxu0 0.0
  %852 = vmatprep.subr.mxu0 0.0
  %853 = vmatpush2.msra.mxu0 0.0
  %854 = vmatprep.subr.mxu0 0.0
  %855 = vmatpush2.msra.mxu0 0.0
  %856 = vmatprep.subr.mxu0 0.0
  %857 = vmatpush2.msra.mxu0 0.0
  %858 = vmatprep.subr.mxu0 0.0
  %859 = vmatpush2.msra.mxu0 0.0
  %860 = vmatprep.mubr.f32.mxu0 0.0
  %861 = vmatmul.mubr.f32.gmra.mxu0 %v794
  %v862 = vpop.f32.mrf.mxu0
  %v863 = vadd.f32 0.0, %v862
  %v864 = vpop.f32.mrf.mxu0
  %865 = vdwg.mxu0
  %v866 = vadd.f32 %v789, %v863
  %v867 = vxor.u32 %v866, 2147483648
  %v868 = vmul.f32 %v867, 1.442695
  %v869 = vpow.pop %v868
  %v870 = vadd.f32 %v869, 1.0
  %v871 = vrcp.pop %v870
  %v872 = vmul.f32 1.0, %v871
  %v873 = vtanh.pop %v866
  %v874 = vmul.f32 %v872, %v775
  %876 = vrot.lane.b32.xlu0 %v873, 64
  %v877 = vpop.permute.xlu0 %876
  %v879 = vmul.f32 %v872, %v877
  %881 = vrot.lane.b32.xlu0 %v879, 32
  %v882 = vpop.permute.xlu0 %881
  %v884 = vadd.f32 %v874, %v882
  %v885 = vtanh.pop %v884
  %887 = vrot.lane.b32.xlu0 %v885, 64
  %v888 = vpop.permute.xlu0 %887
  %v890 = vmul.f32 %v872, %v888
  %892 = vrot.lane.b32.xlu0 %v890, 32
  %v893 = vpop.permute.xlu0 %892
  %s895 = scalar_lea.vmem %s2, 14
  %896 = vst.msk [vmem:[%s895] sm:$0x3] %vm132, %v893
  %897 = vst.msk [vmem:[#allocation2] sm:$0x3] %vm132, %v893
  %899 = vrot.lane.b32.xlu0 %v884, 96
  %v900 = vpop.permute.xlu0 %899
  %902 = vst.msk [vmem:[#allocation3] sm:$0x3] %vm132, %v900
  // Predicated region
  $region14: #{_lambda_.4} parent=0 // pred_check
    _
  $region15: #{_lambda_.4} parent=0 // pred_check_branch
    %904 = sbr.rel (0) target = $region17
  $region16: #{_lambda_.4} parent=0 // pred_region
    _
  $region17: #{_lambda_.4} parent=0 // pred_fallthru
    _
  // Predicated region
  $region18: #{_lambda_.4} parent=0 // pred_check
    _
  $region19: #{_lambda_.4} parent=0 // pred_check_branch
    %906 = sbr.rel (0) target = $region21
  $region20: #{_lambda_.4} parent=0 // pred_region
    _
  $region21: #{_lambda_.4} parent=0 // pred_fallthru
    _

</llo_original>
